<compile_context>
chip_gen: v5e
topology: v5e:2x2
jax: 0.10.0
libtpu: 0.0.40
codegen_flags: <defaults>
</compile_context>

<pallas_src>
import functools

import numpy as np
import jax
import jax.numpy as jnp
from jax import lax
from jax.experimental import pallas as pl
from jax.experimental.pallas import tpu as pltpu


_PADL = 128   # lane-aligned left pad of the depthwise scratch
_PADR = 128   # right pad (only first W+1 lanes are ever read)


def _sigmoid_k(x):
    # sigmoid via EUP exp + approx reciprocal (keeps the divide off the VALU)
    return pl.reciprocal(1.0 + jnp.exp(-x), approx=True)


def _silu_k(x):
    return x * _sigmoid_k(x)


def mbconv_kernel(x_ref, mask_ref,
                  w_exp_ref, b1_ref,
                  w_dw_ref, b2_ref,
                  w_se1_ref, b_se1_ref,
                  w_se2_ref, b_se2_ref,
                  w_proj_ref, b3_ref,
                  out_ref,
                  pad_ref,
                  *, H, W):
    Cmid = w_exp_ref.shape[0]
    TOT = x_ref.shape[1]                       # NB * H * W pixels on the lane axis

    x = x_ref[...]                             # (Cin, TOT) f32 (kept for residual)
    xb = x.astype(jnp.bfloat16)

    # ---- expand 1x1 conv (BN scale pre-folded into weight) + bias + SiLU ----
    e = jnp.dot(w_exp_ref[...], xb,
                preferred_element_type=jnp.float32) + b1_ref[...]
    e = _silu_k(e)                             # (Cmid, TOT)

    # ---- depthwise 3x3, stride 1, padding 1 ------------------------------
    # lane-aligned padded scratch: [128 zeros | interior TOT | 128 zeros].
    # Only the borders are zeroed (cheap, aligned); the interior is fully
    # overwritten every step.  Out-of-range taps are additionally masked, so
    # the border zeros only guard against NaN/Inf garbage propagation.
    pad_ref[:, 0:_PADL] = jnp.zeros((Cmid, _PADL), jnp.float32)
    pad_ref[:, _PADL + TOT:_PADL + TOT + _PADR] = jnp.zeros(
        (Cmid, _PADR), jnp.float32)
    pad_ref[:, _PADL:_PADL + TOT] = e          # lane-aligned interior store

    acc = jnp.zeros((Cmid, TOT), jnp.float32)
    k = 0
    for dh in (-1, 0, 1):
        for dw in (-1, 0, 1):
            off = dh * W + dw
            tap = pad_ref[:, _PADL + off:_PADL + off + TOT]   # (Cmid, TOT)
            m = mask_ref[k:k + 1, :]                          # (1, TOT) boundary mask
            acc = acc + (tap * m) * w_dw_ref[:, k:k + 1]      # per-channel weight
            k += 1
    d = _silu_k(acc + b2_ref[...])             # (Cmid, TOT)

    # ---- SE block (AvgPool2d(1) is identity -> per-pixel channel gating) ----
    db = d.astype(jnp.bfloat16)
    s = jnp.dot(w_se1_ref[...], db,
                preferred_element_type=jnp.float32) + b_se1_ref[...]
    s = _silu_k(s)                             # (Csq, TOT)
    s = jnp.dot(w_se2_ref[...], s.astype(jnp.bfloat16),
                preferred_element_type=jnp.float32) + b_se2_ref[...]
    g = d * _sigmoid_k(s)                      # (Cmid, TOT)

    # ---- project 1x1 conv (BN scale pre-folded) + bias, no activation ----
    p = jnp.dot(w_proj_ref[...], g.astype(jnp.bfloat16),
                preferred_element_type=jnp.float32) + b3_ref[...]

    # ---- id-skip shortcut (stride==1, in_filters==out_filters) ----
    out_ref[...] = (p + x).astype(out_ref.dtype)


def mbconv_forward(x_nchw, params, *, batch_block=None):
    """x_nchw: (N, Cin, H, W) like the PyTorch module.  Returns (N, Cout, H, W)."""
    N, Cin, H, W = x_nchw.shape
    Cmid = params["w_exp"].shape[1]
    Csq = params["w_se1"].shape[1]
    Cout = params["w_proj"].shape[1]
    assert Cin == Cout, "id-skip shortcut requires in_filters == out_filters"
    assert W + 1 <= _PADL

    PIX = H * W
    NB = N if batch_block is None else batch_block    # images per grid step
    assert N % NB == 0
    TOT = NB * PIX

    # --- channels-on-sublanes / pixels-on-lanes relayout (host-side, XLA) ---
    x_cm = jnp.transpose(x_nchw.reshape(N, Cin, PIX), (1, 0, 2)).reshape(Cin, N * PIX)

    # --- fold BN scales into weights; transpose to [C_out_dim, C_in_dim] ---
    bn1_s, bn1_b = params["bn1_s"][0], params["bn1_b"][0]
    bn2_s, bn2_b = params["bn2_s"][0], params["bn2_b"][0]
    bn3_s, bn3_b = params["bn3_s"][0], params["bn3_b"][0]

    w_exp_t = (params["w_exp"].T * bn1_s[:, None]).astype(jnp.bfloat16)   # (Cmid, Cin)
    b1 = bn1_b[:, None]                                                   # (Cmid, 1)
    w_dw_ck = (jnp.transpose(params["w_dw"], (2, 0, 1)).reshape(Cmid, 9)
               * bn2_s[:, None]).astype(jnp.float32)                      # (Cmid, 9)
    b2 = bn2_b[:, None]                                                   # (Cmid, 1)
    w_se1_t = params["w_se1"].T.astype(jnp.bfloat16)                      # (Csq, Cmid)
    b_se1 = params["b_se1"][0][:, None]                                   # (Csq, 1)
    w_se2_t = params["w_se2"].T.astype(jnp.bfloat16)                      # (Cmid, Csq)
    b_se2 = params["b_se2"][0][:, None]                                   # (Cmid, 1)
    w_proj_t = (params["w_proj"].T * bn3_s[:, None]).astype(jnp.bfloat16) # (Cout, Cmid)
    b3 = bn3_b[:, None]                                                   # (Cout, 1)

    # --- per-tap spatial boundary masks (static, computed on host) ---
    local = np.arange(TOT, dtype=np.int64) % PIX
    r = local // W
    c = local % W
    masks_np = np.zeros((9, TOT), np.float32)
    k = 0
    for dh in (-1, 0, 1):
        for dw in (-1, 0, 1):
            valid = ((r + dh >= 0) & (r + dh < H) & (c + dw >= 0) & (c + dw < W))
            masks_np[k] = valid.astype(np.float32)
            k += 1
    masks = jnp.asarray(masks_np)

    kernel = functools.partial(mbconv_kernel, H=H, W=W)

    in_specs = [
        pl.BlockSpec((Cin, TOT), lambda b: (0, b)),      # x (channels x pixels)
        pl.BlockSpec((9, TOT), lambda b: (0, 0)),        # depthwise boundary masks
        pl.BlockSpec((Cmid, Cin), lambda b: (0, 0)),     # w_exp (BN folded, bf16)
        pl.BlockSpec((Cmid, 1), lambda b: (0, 0)),       # b1
        pl.BlockSpec((Cmid, 9), lambda b: (0, 0)),       # w_dw (BN folded)
        pl.BlockSpec((Cmid, 1), lambda b: (0, 0)),       # b2
        pl.BlockSpec((Csq, Cmid), lambda b: (0, 0)),     # w_se1 (bf16)
        pl.BlockSpec((Csq, 1), lambda b: (0, 0)),        # b_se1
        pl.BlockSpec((Cmid, Csq), lambda b: (0, 0)),     # w_se2 (bf16)
        pl.BlockSpec((Cmid, 1), lambda b: (0, 0)),       # b_se2
        pl.BlockSpec((Cout, Cmid), lambda b: (0, 0)),    # w_proj (BN folded, bf16)
        pl.BlockSpec((Cout, 1), lambda b: (0, 0)),       # b3
    ]
    out_spec = pl.BlockSpec((Cout, TOT), lambda b: (0, b))

    out_cm = pl.pallas_call(
        kernel,
        out_shape=jax.ShapeDtypeStruct((Cout, N * PIX), jnp.float32),
        grid_spec=pltpu.PrefetchScalarGridSpec(
            num_scalar_prefetch=0,
            grid=(N // NB,),
            in_specs=in_specs,
            out_specs=out_spec,
            scratch_shapes=[pltpu.VMEM((Cmid, _PADL + TOT + _PADR), jnp.float32)],
        ),
        compiler_params=pltpu.CompilerParams(
            dimension_semantics=("parallel",)),
    )(x_cm, masks, w_exp_t, b1, w_dw_ck, b2,
      w_se1_t, b_se1, w_se2_t, b_se2, w_proj_t, b3)

    out = jnp.transpose(out_cm.reshape(Cout, N, PIX), (1, 0, 2)).reshape(N, Cout, H, W)
    return out


# ------------------------- pure-JAX reference --------------------------------
def ref_forward_nchw(x_nchw, p):
    x = jnp.transpose(x_nchw, (0, 2, 3, 1))        # NHWC
    e = jnp.einsum("nhwc,cd->nhwd", x, p["w_exp"])
    e = e * p["bn1_s"][0] + p["bn1_b"][0]
    e = jax.nn.silu(e)
    Cmid = e.shape[-1]
    dw_filter = p["w_dw"].reshape(3, 3, 1, Cmid)   # HWIO, depthwise
    d = lax.conv_general_dilated(
        e, dw_filter, window_strides=(1, 1), padding=((1, 1), (1, 1)),
        dimension_numbers=("NHWC", "HWIO", "NHWC"),
        feature_group_count=Cmid)
    d = d * p["bn2_s"][0] + p["bn2_b"][0]
    d = jax.nn.silu(d)
    s = jnp.einsum("nhwc,cd->nhwd", d, p["w_se1"]) + p["b_se1"][0]
    s = jax.nn.silu(s)
    s = jnp.einsum("nhwc,cd->nhwd", s, p["w_se2"]) + p["b_se2"][0]
    d = d * jax.nn.sigmoid(s)
    o = jnp.einsum("nhwc,cd->nhwd", d, p["w_proj"])
    o = o * p["bn3_s"][0] + p["bn3_b"][0]
    o = o + x
    return jnp.transpose(o, (0, 3, 1, 2))


# ------------------------- deterministic parameters --------------------------
def make_params(key, cin, cmid, csq, cout):
    ks = jax.random.split(key, 20)
    eps = 1e-5

    def bn_fold(kg, kb, km, kv, c):
        gamma = 0.8 + 0.4 * jax.random.uniform(kg, (c,), jnp.float32)
        beta = 0.1 * jax.random.normal(kb, (c,), jnp.float32)
        mean = 0.1 * jax.random.normal(km, (c,), jnp.float32)
        var = 0.5 + jax.random.uniform(kv, (c,), jnp.float32)
        scale = gamma / jnp.sqrt(var + eps)
        bias = beta - mean * scale
        return scale.reshape(1, c), bias.reshape(1, c)

    bn1_s, bn1_b = bn_fold(ks[0], ks[1], ks[2], ks[3], cmid)
    bn2_s, bn2_b = bn_fold(ks[4], ks[5], ks[6], ks[7], cmid)
    bn3_s, bn3_b = bn_fold(ks[8], ks[9], ks[10], ks[11], cout)

    return {
        "w_exp": jax.random.normal(ks[12], (cin, cmid), jnp.float32) / jnp.sqrt(cin),
        "bn1_s": bn1_s, "bn1_b": bn1_b,
        "w_dw": jax.random.normal(ks[13], (3, 3, cmid), jnp.float32) / 3.0,
        "bn2_s": bn2_s, "bn2_b": bn2_b,
        "w_se1": jax.random.normal(ks[14], (cmid, csq), jnp.float32) / jnp.sqrt(cmid),
        "b_se1": 0.1 * jax.random.normal(ks[15], (1, csq), jnp.float32),
        "w_se2": jax.random.normal(ks[16], (csq, cmid), jnp.float32) / jnp.sqrt(csq),
        "b_se2": 0.1 * jax.random.normal(ks[17], (1, cmid), jnp.float32),
        "w_proj": jax.random.normal(ks[18], (cmid, cout), jnp.float32) / jnp.sqrt(cmid),
        "bn3_s": bn3_s, "bn3_b": bn3_b,
    }


if __name__ == "__main__":
    # block_args: in_filters=8, out_filters=8, expand_ratio=4, kernel_size=3,
    # strides=1, se_ratio=0.25, id_skip=True; act_layer = SiLU (Swish).
    N, H, W = 2, 16, 16
    IN_FILTERS, EXPAND_RATIO, OUT_FILTERS, SE_RATIO = 8, 4, 8, 0.25
    CMID = IN_FILTERS * EXPAND_RATIO
    CSQ = max(1, int(IN_FILTERS * SE_RATIO))

    key = jax.random.PRNGKey(0)
    kx, kp = jax.random.split(key)
    x = jax.random.normal(kx, (N, IN_FILTERS, H, W), jnp.float32)   # NCHW like torch
    params = make_params(kp, IN_FILTERS, CMID, CSQ, OUT_FILTERS)

    out = jax.block_until_ready(mbconv_forward(x, params))
    ref = jax.block_until_ready(ref_forward_nchw(x, params))

    assert out.shape == (N, OUT_FILTERS, H, W)
    assert bool(jnp.all(jnp.isfinite(out)))
    max_err = float(jnp.max(jnp.abs(out - ref)))
    assert bool(jnp.allclose(out, ref, rtol=5e-2, atol=5e-2)), (
        "max abs diff %g" % max_err)

    print("KERNEL_OK")
</pallas_src>

<mosaic_0001>
module attributes {stable_mosaic.version = 11 : i64} {
  func.func @mbconv_kernel(%arg0: i32, %arg1: memref<8x512xf32, #tpu.memory_space<vmem>>, %arg2: memref<9x512xf32, #tpu.memory_space<vmem>>, %arg3: memref<32x8xbf16, #tpu.memory_space<vmem>>, %arg4: memref<32x1xf32, #tpu.memory_space<vmem>>, %arg5: memref<32x9xf32, #tpu.memory_space<vmem>>, %arg6: memref<32x1xf32, #tpu.memory_space<vmem>>, %arg7: memref<2x32xbf16, #tpu.memory_space<vmem>>, %arg8: memref<2x1xf32, #tpu.memory_space<vmem>>, %arg9: memref<32x2xbf16, #tpu.memory_space<vmem>>, %arg10: memref<32x1xf32, #tpu.memory_space<vmem>>, %arg11: memref<8x32xbf16, #tpu.memory_space<vmem>>, %arg12: memref<8x1xf32, #tpu.memory_space<vmem>>, %arg13: memref<8x512xf32, #tpu.memory_space<vmem>>, %arg14: memref<32x768xf32, #tpu.memory_space<vmem>>) attributes {dimension_semantics = [#tpu.dimension_semantics<parallel>], iteration_bounds = array<i64: 1>, scalar_prefetch = 0 : i64, scratch_operands = 1 : i64, tpu.core_type = #tpu.core_type<tc>, window_params = [{transform_indices = @transform_0, window_bounds = array<i64: 8, 512>}, {pipeline_mode = #tpu.pipeline_mode<synchronous>, transform_indices = @transform_1, window_bounds = array<i64: 9, 512>}, {pipeline_mode = #tpu.pipeline_mode<synchronous>, transform_indices = @transform_2, window_bounds = array<i64: 32, 8>}, {pipeline_mode = #tpu.pipeline_mode<synchronous>, transform_indices = @transform_3, window_bounds = array<i64: 32, 1>}, {pipeline_mode = #tpu.pipeline_mode<synchronous>, transform_indices = @transform_4, window_bounds = array<i64: 32, 9>}, {pipeline_mode = #tpu.pipeline_mode<synchronous>, transform_indices = @transform_5, window_bounds = array<i64: 32, 1>}, {pipeline_mode = #tpu.pipeline_mode<synchronous>, transform_indices = @transform_6, window_bounds = array<i64: 2, 32>}, {pipeline_mode = #tpu.pipeline_mode<synchronous>, transform_indices = @transform_7, window_bounds = array<i64: 2, 1>}, {pipeline_mode = #tpu.pipeline_mode<synchronous>, transform_indices = @transform_8, window_bounds = array<i64: 32, 2>}, {pipeline_mode = #tpu.pipeline_mode<synchronous>, transform_indices = @transform_9, window_bounds = array<i64: 32, 1>}, {pipeline_mode = #tpu.pipeline_mode<synchronous>, transform_indices = @transform_10, window_bounds = array<i64: 8, 32>}, {pipeline_mode = #tpu.pipeline_mode<synchronous>, transform_indices = @transform_11, window_bounds = array<i64: 8, 1>}, {transform_indices = @transform_12, window_bounds = array<i64: 8, 512>}]} {
    %c0 = arith.constant 0 : index
    %c0_0 = arith.constant 0 : index
    %0 = vector.load %arg1[%c0, %c0_0] : memref<8x512xf32, #tpu.memory_space<vmem>>, vector<8x512xf32>
    %1 = arith.truncf %0 : vector<8x512xf32> to vector<8x512xbf16>
    %c0_1 = arith.constant 0 : index
    %c0_2 = arith.constant 0 : index
    %2 = vector.load %arg3[%c0_1, %c0_2] : memref<32x8xbf16, #tpu.memory_space<vmem>>, vector<32x8xbf16>
    %cst = arith.constant dense<0.000000e+00> : vector<32x512xf32>
    %3 = tpu.matmul %2, %1, %cst {dimension_numbers = #tpu.dot_dimension_numbers<[1], [0], [0], [1], [0, 0, 1, 1], [], []>} : vector<32x8xbf16>, vector<8x512xbf16>, vector<32x512xf32> -> vector<32x512xf32>
    %c0_3 = arith.constant 0 : index
    %c0_4 = arith.constant 0 : index
    %4 = vector.load %arg4[%c0_3, %c0_4] : memref<32x1xf32, #tpu.memory_space<vmem>>, vector<32x1xf32>
    %5 = vector.broadcast %4 : vector<32x1xf32> to vector<32x512xf32>
    %6 = arith.addf %3, %5 : vector<32x512xf32>
    %cst_5 = arith.constant 0.000000e+00 : f32
    %7 = vector.broadcast %cst_5 : f32 to vector<32x512xf32>
    %8 = arith.subf %7, %6 : vector<32x512xf32>
    %9 = math.exp %8 : vector<32x512xf32>
    %cst_6 = arith.constant 1.000000e+00 : f32
    %10 = vector.broadcast %cst_6 : f32 to vector<32x512xf32>
    %11 = arith.addf %10, %9 : vector<32x512xf32>
    %12 = tpu.reciprocal %11 {approx = true} : vector<32x512xf32> -> vector<32x512xf32>
    %13 = arith.mulf %6, %12 : vector<32x512xf32>
    %cst_7 = arith.constant 0.000000e+00 : f32
    %14 = vector.broadcast %cst_7 : f32 to vector<32x128xf32>
    %c0_8 = arith.constant 0 : index
    %c0_9 = arith.constant 0 : index
    %15 = vector.load %arg14[%c0_8, %c0_9] : memref<32x768xf32, #tpu.memory_space<vmem>>, vector<32x128xf32>
    tpu.vector_store %arg14[%c0_8, %c0_9], %14 {strides = array<i32>} : memref<32x768xf32, #tpu.memory_space<vmem>>, vector<32x128xf32>,
    %cst_10 = arith.constant 0.000000e+00 : f32
    %16 = vector.broadcast %cst_10 : f32 to vector<32x128xf32>
    %c0_11 = arith.constant 0 : index
    %c640 = arith.constant 640 : index
    %17 = vector.load %arg14[%c0_11, %c640] : memref<32x768xf32, #tpu.memory_space<vmem>>, vector<32x128xf32>
    tpu.vector_store %arg14[%c0_11, %c640], %16 {strides = array<i32>} : memref<32x768xf32, #tpu.memory_space<vmem>>, vector<32x128xf32>,
    %c0_12 = arith.constant 0 : index
    %c128 = arith.constant 128 : index
    %18 = vector.load %arg14[%c0_12, %c128] : memref<32x768xf32, #tpu.memory_space<vmem>>, vector<32x512xf32>
    tpu.vector_store %arg14[%c0_12, %c128], %13 {strides = array<i32>} : memref<32x768xf32, #tpu.memory_space<vmem>>, vector<32x512xf32>,
    %cst_13 = arith.constant 0.000000e+00 : f32
    %19 = vector.broadcast %cst_13 : f32 to vector<32x512xf32>
    %c0_14 = arith.constant 0 : index
    %c111 = arith.constant 111 : index
    %20 = vector.load %arg14[%c0_14, %c111] : memref<32x768xf32, #tpu.memory_space<vmem>>, vector<32x512xf32>
    %c0_15 = arith.constant 0 : index
    %c0_16 = arith.constant 0 : index
    %21 = vector.load %arg2[%c0_15, %c0_16] : memref<9x512xf32, #tpu.memory_space<vmem>>, vector<1x512xf32>
    %22 = vector.broadcast %21 : vector<1x512xf32> to vector<32x512xf32>
    %23 = arith.mulf %20, %22 : vector<32x512xf32>
    %c0_17 = arith.constant 0 : index
    %c0_18 = arith.constant 0 : index
    %24 = vector.load %arg5[%c0_17, %c0_18] : memref<32x9xf32, #tpu.memory_space<vmem>>, vector<32x1xf32>
    %25 = vector.broadcast %24 : vector<32x1xf32> to vector<32x512xf32>
    %26 = arith.mulf %23, %25 : vector<32x512xf32>
    %27 = arith.addf %19, %26 : vector<32x512xf32>
    %c0_19 = arith.constant 0 : index
    %c112 = arith.constant 112 : index
    %28 = vector.load %arg14[%c0_19, %c112] : memref<32x768xf32, #tpu.memory_space<vmem>>, vector<32x512xf32>
    %c1 = arith.constant 1 : index
    %c0_20 = arith.constant 0 : index
    %29 = vector.load %arg2[%c1, %c0_20] : memref<9x512xf32, #tpu.memory_space<vmem>>, vector<1x512xf32>
    %30 = vector.broadcast %29 : vector<1x512xf32> to vector<32x512xf32>
    %31 = arith.mulf %28, %30 : vector<32x512xf32>
    %c0_21 = arith.constant 0 : index
    %c1_22 = arith.constant 1 : index
    %32 = vector.load %arg5[%c0_21, %c1_22] : memref<32x9xf32, #tpu.memory_space<vmem>>, vector<32x1xf32>
    %33 = vector.broadcast %32 : vector<32x1xf32> to vector<32x512xf32>
    %34 = arith.mulf %31, %33 : vector<32x512xf32>
    %35 = arith.addf %27, %34 : vector<32x512xf32>
    %c0_23 = arith.constant 0 : index
    %c113 = arith.constant 113 : index
    %36 = vector.load %arg14[%c0_23, %c113] : memref<32x768xf32, #tpu.memory_space<vmem>>, vector<32x512xf32>
    %c2 = arith.constant 2 : index
    %c0_24 = arith.constant 0 : index
    %37 = vector.load %arg2[%c2, %c0_24] : memref<9x512xf32, #tpu.memory_space<vmem>>, vector<1x512xf32>
    %38 = vector.broadcast %37 : vector<1x512xf32> to vector<32x512xf32>
    %39 = arith.mulf %36, %38 : vector<32x512xf32>
    %c0_25 = arith.constant 0 : index
    %c2_26 = arith.constant 2 : index
    %40 = vector.load %arg5[%c0_25, %c2_26] : memref<32x9xf32, #tpu.memory_space<vmem>>, vector<32x1xf32>
    %41 = vector.broadcast %40 : vector<32x1xf32> to vector<32x512xf32>
    %42 = arith.mulf %39, %41 : vector<32x512xf32>
    %43 = arith.addf %35, %42 : vector<32x512xf32>
    %c0_27 = arith.constant 0 : index
    %c127 = arith.constant 127 : index
    %44 = vector.load %arg14[%c0_27, %c127] : memref<32x768xf32, #tpu.memory_space<vmem>>, vector<32x512xf32>
    %c3 = arith.constant 3 : index
    %c0_28 = arith.constant 0 : index
    %45 = vector.load %arg2[%c3, %c0_28] : memref<9x512xf32, #tpu.memory_space<vmem>>, vector<1x512xf32>
    %46 = vector.broadcast %45 : vector<1x512xf32> to vector<32x512xf32>
    %47 = arith.mulf %44, %46 : vector<32x512xf32>
    %c0_29 = arith.constant 0 : index
    %c3_30 = arith.constant 3 : index
    %48 = vector.load %arg5[%c0_29, %c3_30] : memref<32x9xf32, #tpu.memory_space<vmem>>, vector<32x1xf32>
    %49 = vector.broadcast %48 : vector<32x1xf32> to vector<32x512xf32>
    %50 = arith.mulf %47, %49 : vector<32x512xf32>
    %51 = arith.addf %43, %50 : vector<32x512xf32>
    %c0_31 = arith.constant 0 : index
    %c128_32 = arith.constant 128 : index
    %52 = vector.load %arg14[%c0_31, %c128_32] : memref<32x768xf32, #tpu.memory_space<vmem>>, vector<32x512xf32>
    %c4 = arith.constant 4 : index
    %c0_33 = arith.constant 0 : index
    %53 = vector.load %arg2[%c4, %c0_33] : memref<9x512xf32, #tpu.memory_space<vmem>>, vector<1x512xf32>
    %54 = vector.broadcast %53 : vector<1x512xf32> to vector<32x512xf32>
    %55 = arith.mulf %52, %54 : vector<32x512xf32>
    %c0_34 = arith.constant 0 : index
    %c4_35 = arith.constant 4 : index
    %56 = vector.load %arg5[%c0_34, %c4_35] : memref<32x9xf32, #tpu.memory_space<vmem>>, vector<32x1xf32>
    %57 = vector.broadcast %56 : vector<32x1xf32> to vector<32x512xf32>
    %58 = arith.mulf %55, %57 : vector<32x512xf32>
    %59 = arith.addf %51, %58 : vector<32x512xf32>
    %c0_36 = arith.constant 0 : index
    %c129 = arith.constant 129 : index
    %60 = vector.load %arg14[%c0_36, %c129] : memref<32x768xf32, #tpu.memory_space<vmem>>, vector<32x512xf32>
    %c5 = arith.constant 5 : index
    %c0_37 = arith.constant 0 : index
    %61 = vector.load %arg2[%c5, %c0_37] : memref<9x512xf32, #tpu.memory_space<vmem>>, vector<1x512xf32>
    %62 = vector.broadcast %61 : vector<1x512xf32> to vector<32x512xf32>
    %63 = arith.mulf %60, %62 : vector<32x512xf32>
    %c0_38 = arith.constant 0 : index
    %c5_39 = arith.constant 5 : index
    %64 = vector.load %arg5[%c0_38, %c5_39] : memref<32x9xf32, #tpu.memory_space<vmem>>, vector<32x1xf32>
    %65 = vector.broadcast %64 : vector<32x1xf32> to vector<32x512xf32>
    %66 = arith.mulf %63, %65 : vector<32x512xf32>
    %67 = arith.addf %59, %66 : vector<32x512xf32>
    %c0_40 = arith.constant 0 : index
    %c143 = arith.constant 143 : index
    %68 = vector.load %arg14[%c0_40, %c143] : memref<32x768xf32, #tpu.memory_space<vmem>>, vector<32x512xf32>
    %c6 = arith.constant 6 : index
    %c0_41 = arith.constant 0 : index
    %69 = vector.load %arg2[%c6, %c0_41] : memref<9x512xf32, #tpu.memory_space<vmem>>, vector<1x512xf32>
    %70 = vector.broadcast %69 : vector<1x512xf32> to vector<32x512xf32>
    %71 = arith.mulf %68, %70 : vector<32x512xf32>
    %c0_42 = arith.constant 0 : index
    %c6_43 = arith.constant 6 : index
    %72 = vector.load %arg5[%c0_42, %c6_43] : memref<32x9xf32, #tpu.memory_space<vmem>>, vector<32x1xf32>
    %73 = vector.broadcast %72 : vector<32x1xf32> to vector<32x512xf32>
    %74 = arith.mulf %71, %73 : vector<32x512xf32>
    %75 = arith.addf %67, %74 : vector<32x512xf32>
    %c0_44 = arith.constant 0 : index
    %c144 = arith.constant 144 : index
    %76 = vector.load %arg14[%c0_44, %c144] : memref<32x768xf32, #tpu.memory_space<vmem>>, vector<32x512xf32>
    %c7 = arith.constant 7 : index
    %c0_45 = arith.constant 0 : index
    %77 = vector.load %arg2[%c7, %c0_45] : memref<9x512xf32, #tpu.memory_space<vmem>>, vector<1x512xf32>
    %78 = vector.broadcast %77 : vector<1x512xf32> to vector<32x512xf32>
    %79 = arith.mulf %76, %78 : vector<32x512xf32>
    %c0_46 = arith.constant 0 : index
    %c7_47 = arith.constant 7 : index
    %80 = vector.load %arg5[%c0_46, %c7_47] : memref<32x9xf32, #tpu.memory_space<vmem>>, vector<32x1xf32>
    %81 = vector.broadcast %80 : vector<32x1xf32> to vector<32x512xf32>
    %82 = arith.mulf %79, %81 : vector<32x512xf32>
    %83 = arith.addf %75, %82 : vector<32x512xf32>
    %c0_48 = arith.constant 0 : index
    %c145 = arith.constant 145 : index
    %84 = vector.load %arg14[%c0_48, %c145] : memref<32x768xf32, #tpu.memory_space<vmem>>, vector<32x512xf32>
    %c8 = arith.constant 8 : index
    %c0_49 = arith.constant 0 : index
    %85 = vector.load %arg2[%c8, %c0_49] : memref<9x512xf32, #tpu.memory_space<vmem>>, vector<1x512xf32>
    %86 = vector.broadcast %85 : vector<1x512xf32> to vector<32x512xf32>
    %87 = arith.mulf %84, %86 : vector<32x512xf32>
    %c0_50 = arith.constant 0 : index
    %c8_51 = arith.constant 8 : index
    %88 = vector.load %arg5[%c0_50, %c8_51] : memref<32x9xf32, #tpu.memory_space<vmem>>, vector<32x1xf32>
    %89 = vector.broadcast %88 : vector<32x1xf32> to vector<32x512xf32>
    %90 = arith.mulf %87, %89 : vector<32x512xf32>
    %91 = arith.addf %83, %90 : vector<32x512xf32>
    %c0_52 = arith.constant 0 : index
    %c0_53 = arith.constant 0 : index
    %92 = vector.load %arg6[%c0_52, %c0_53] : memref<32x1xf32, #tpu.memory_space<vmem>>, vector<32x1xf32>
    %93 = vector.broadcast %92 : vector<32x1xf32> to vector<32x512xf32>
    %94 = arith.addf %91, %93 : vector<32x512xf32>
    %cst_54 = arith.constant 0.000000e+00 : f32
    %95 = vector.broadcast %cst_54 : f32 to vector<32x512xf32>
    %96 = arith.subf %95, %94 : vector<32x512xf32>
    %97 = math.exp %96 : vector<32x512xf32>
    %cst_55 = arith.constant 1.000000e+00 : f32
    %98 = vector.broadcast %cst_55 : f32 to vector<32x512xf32>
    %99 = arith.addf %98, %97 : vector<32x512xf32>
    %100 = tpu.reciprocal %99 {approx = true} : vector<32x512xf32> -> vector<32x512xf32>
    %101 = arith.mulf %94, %100 : vector<32x512xf32>
    %102 = arith.truncf %101 : vector<32x512xf32> to vector<32x512xbf16>
    %c0_56 = arith.constant 0 : index
    %c0_57 = arith.constant 0 : index
    %103 = vector.load %arg7[%c0_56, %c0_57] : memref<2x32xbf16, #tpu.memory_space<vmem>>, vector<2x32xbf16>
    %cst_58 = arith.constant dense<0.000000e+00> : vector<2x512xf32>
    %104 = tpu.matmul %103, %102, %cst_58 {dimension_numbers = #tpu.dot_dimension_numbers<[1], [0], [0], [1], [0, 0, 1, 1], [], []>} : vector<2x32xbf16>, vector<32x512xbf16>, vector<2x512xf32> -> vector<2x512xf32>
    %c0_59 = arith.constant 0 : index
    %c0_60 = arith.constant 0 : index
    %105 = vector.load %arg8[%c0_59, %c0_60] : memref<2x1xf32, #tpu.memory_space<vmem>>, vector<2x1xf32>
    %106 = vector.broadcast %105 : vector<2x1xf32> to vector<2x512xf32>
    %107 = arith.addf %104, %106 : vector<2x512xf32>
    %cst_61 = arith.constant 0.000000e+00 : f32
    %108 = vector.broadcast %cst_61 : f32 to vector<2x512xf32>
    %109 = arith.subf %108, %107 : vector<2x512xf32>
    %110 = math.exp %109 : vector<2x512xf32>
    %cst_62 = arith.constant 1.000000e+00 : f32
    %111 = vector.broadcast %cst_62 : f32 to vector<2x512xf32>
    %112 = arith.addf %111, %110 : vector<2x512xf32>
    %113 = tpu.reciprocal %112 {approx = true} : vector<2x512xf32> -> vector<2x512xf32>
    %114 = arith.mulf %107, %113 : vector<2x512xf32>
    %c0_63 = arith.constant 0 : index
    %c0_64 = arith.constant 0 : index
    %115 = vector.load %arg9[%c0_63, %c0_64] : memref<32x2xbf16, #tpu.memory_space<vmem>>, vector<32x2xbf16>
    %116 = arith.truncf %114 : vector<2x512xf32> to vector<2x512xbf16>
    %cst_65 = arith.constant dense<0.000000e+00> : vector<32x512xf32>
    %117 = tpu.matmul %115, %116, %cst_65 {dimension_numbers = #tpu.dot_dimension_numbers<[1], [0], [0], [1], [0, 0, 1, 1], [], []>} : vector<32x2xbf16>, vector<2x512xbf16>, vector<32x512xf32> -> vector<32x512xf32>
    %c0_66 = arith.constant 0 : index
    %c0_67 = arith.constant 0 : index
    %118 = vector.load %arg10[%c0_66, %c0_67] : memref<32x1xf32, #tpu.memory_space<vmem>>, vector<32x1xf32>
    %119 = vector.broadcast %118 : vector<32x1xf32> to vector<32x512xf32>
    %120 = arith.addf %117, %119 : vector<32x512xf32>
    %cst_68 = arith.constant 0.000000e+00 : f32
    %121 = vector.broadcast %cst_68 : f32 to vector<32x512xf32>
    %122 = arith.subf %121, %120 : vector<32x512xf32>
    %123 = math.exp %122 : vector<32x512xf32>
    %cst_69 = arith.constant 1.000000e+00 : f32
    %124 = vector.broadcast %cst_69 : f32 to vector<32x512xf32>
    %125 = arith.addf %124, %123 : vector<32x512xf32>
    %126 = tpu.reciprocal %125 {approx = true} : vector<32x512xf32> -> vector<32x512xf32>
    %127 = arith.mulf %101, %126 : vector<32x512xf32>
    %c0_70 = arith.constant 0 : index
    %c0_71 = arith.constant 0 : index
    %128 = vector.load %arg11[%c0_70, %c0_71] : memref<8x32xbf16, #tpu.memory_space<vmem>>, vector<8x32xbf16>
    %129 = arith.truncf %127 : vector<32x512xf32> to vector<32x512xbf16>
    %cst_72 = arith.constant dense<0.000000e+00> : vector<8x512xf32>
    %130 = tpu.matmul %128, %129, %cst_72 {dimension_numbers = #tpu.dot_dimension_numbers<[1], [0], [0], [1], [0, 0, 1, 1], [], []>} : vector<8x32xbf16>, vector<32x512xbf16>, vector<8x512xf32> -> vector<8x512xf32>
    %c0_73 = arith.constant 0 : index
    %c0_74 = arith.constant 0 : index
    %131 = vector.load %arg12[%c0_73, %c0_74] : memref<8x1xf32, #tpu.memory_space<vmem>>, vector<8x1xf32>
    %132 = vector.broadcast %131 : vector<8x1xf32> to vector<8x512xf32>
    %133 = arith.addf %130, %132 : vector<8x512xf32>
    %134 = arith.addf %133, %0 : vector<8x512xf32>
    %c0_75 = arith.constant 0 : index
    %c0_76 = arith.constant 0 : index
    %135 = vector.load %arg13[%c0_75, %c0_76] : memref<8x512xf32, #tpu.memory_space<vmem>>, vector<8x512xf32>
    tpu.vector_store %arg13[%c0_75, %c0_76], %134 {strides = array<i32>} : memref<8x512xf32, #tpu.memory_space<vmem>>, vector<8x512xf32>,
    return
  }
  func.func @transform_0(%arg0: i32) -> (i32, i32) {
    %c0_i32 = arith.constant 0 : i32
    %c0_i32_0 = arith.constant 0 : i32
    return %c0_i32, %arg0 : i32, i32
  }
  func.func @transform_1(%arg0: i32) -> (i32, i32) {
    %c0_i32 = arith.constant 0 : i32
    %c0_i32_0 = arith.constant 0 : i32
    %c0_i32_1 = arith.constant 0 : i32
    return %c0_i32, %c0_i32_0 : i32, i32
  }
  func.func @transform_2(%arg0: i32) -> (i32, i32) {
    %c0_i32 = arith.constant 0 : i32
    %c0_i32_0 = arith.constant 0 : i32
    %c0_i32_1 = arith.constant 0 : i32
    return %c0_i32, %c0_i32_0 : i32, i32
  }
  func.func @transform_3(%arg0: i32) -> (i32, i32) {
    %c0_i32 = arith.constant 0 : i32
    %c0_i32_0 = arith.constant 0 : i32
    %c0_i32_1 = arith.constant 0 : i32
    return %c0_i32, %c0_i32_0 : i32, i32
  }
  func.func @transform_4(%arg0: i32) -> (i32, i32) {
    %c0_i32 = arith.constant 0 : i32
    %c0_i32_0 = arith.constant 0 : i32
    %c0_i32_1 = arith.constant 0 : i32
    return %c0_i32, %c0_i32_0 : i32, i32
  }
  func.func @transform_5(%arg0: i32) -> (i32, i32) {
    %c0_i32 = arith.constant 0 : i32
    %c0_i32_0 = arith.constant 0 : i32
    %c0_i32_1 = arith.constant 0 : i32
    return %c0_i32, %c0_i32_0 : i32, i32
  }
  func.func @transform_6(%arg0: i32) -> (i32, i32) {
    %c0_i32 = arith.constant 0 : i32
    %c0_i32_0 = arith.constant 0 : i32
    %c0_i32_1 = arith.constant 0 : i32
    return %c0_i32, %c0_i32_0 : i32, i32
  }
  func.func @transform_7(%arg0: i32) -> (i32, i32) {
    %c0_i32 = arith.constant 0 : i32
    %c0_i32_0 = arith.constant 0 : i32
    %c0_i32_1 = arith.constant 0 : i32
    return %c0_i32, %c0_i32_0 : i32, i32
  }
  func.func @transform_8(%arg0: i32) -> (i32, i32) {
    %c0_i32 = arith.constant 0 : i32
    %c0_i32_0 = arith.constant 0 : i32
    %c0_i32_1 = arith.constant 0 : i32
    return %c0_i32, %c0_i32_0 : i32, i32
  }
  func.func @transform_9(%arg0: i32) -> (i32, i32) {
    %c0_i32 = arith.constant 0 : i32
    %c0_i32_0 = arith.constant 0 : i32
    %c0_i32_1 = arith.constant 0 : i32
    return %c0_i32, %c0_i32_0 : i32, i32
  }
  func.func @transform_10(%arg0: i32) -> (i32, i32) {
    %c0_i32 = arith.constant 0 : i32
    %c0_i32_0 = arith.constant 0 : i32
    %c0_i32_1 = arith.constant 0 : i32
    return %c0_i32, %c0_i32_0 : i32, i32
  }
  func.func @transform_11(%arg0: i32) -> (i32, i32) {
    %c0_i32 = arith.constant 0 : i32
    %c0_i32_0 = arith.constant 0 : i32
    %c0_i32_1 = arith.constant 0 : i32
    return %c0_i32, %c0_i32_0 : i32, i32
  }
  func.func @transform_12(%arg0: i32) -> (i32, i32) {
    %c0_i32 = arith.constant 0 : i32
    %c0_i32_0 = arith.constant 0 : i32
    return %c0_i32, %arg0 : i32, i32
  }
}

</mosaic_0001>

<llo_original>
// kernel: tpu_custom_call.1
$region0: #{tpu_custom_call.1}
  #allocation0 [shape = 'u32[]', space=smem, size = 0x4, offset = 0x4, fixed_abs, tag = 'smem constant byte address 0x4 - core index']
  #allocation1 [shape = 'u32[72,128]{1,0:T(1,128)}', space=vmem, size = 0x9000, scoped, tag = 'internal scratch']
  #allocation2 [shape = 'f32[32,768]{1,0:T(8,128)}', space=vmem, size = 0x18000, scoped, tag = 'scratch operand']
  %s0 = inlined_call_operand.vmem [shape: f32[8,512], index: 0, kind: input, shape index: {}]
  %s1 = inlined_call_operand.vmem [shape: f32[9,512], index: 1, kind: input, shape index: {}]
  %s2 = inlined_call_operand.vmem [shape: bf16[32,8], index: 2, kind: input, shape index: {}]
  %s3 = inlined_call_operand.vmem [shape: f32[32,1], index: 3, kind: input, shape index: {}]
  %s4 = inlined_call_operand.vmem [shape: f32[32,9], index: 4, kind: input, shape index: {}]
  %s5 = inlined_call_operand.vmem [shape: f32[32,1], index: 5, kind: input, shape index: {}]
  %s6 = inlined_call_operand.vmem [shape: bf16[2,32], index: 6, kind: input, shape index: {}]
  %s7 = inlined_call_operand.vmem [shape: f32[2,1], index: 7, kind: input, shape index: {}]
  %s8 = inlined_call_operand.vmem [shape: bf16[32,2], index: 8, kind: input, shape index: {}]
  %s9 = inlined_call_operand.vmem [shape: f32[32,1], index: 9, kind: input, shape index: {}]
  %s10 = inlined_call_operand.vmem [shape: bf16[8,32], index: 10, kind: input, shape index: {}]
  %s11 = inlined_call_operand.vmem [shape: f32[8,1], index: 11, kind: input, shape index: {}]
  %s12 = inlined_call_operand.hbm [shape: f32[8,512], index: 12, kind: output, shape index: {}]
  %s13 = sld [smem:[#allocation0]]
  $region58: #{tpu_custom_call.1} parent=0
    _
  %s15 = ssub.s32 1, %s13
  %s16 = scalar_select 0, %s15, %s13
  $region1: #{tpu_custom_call.1} parent=0
    #allocation3 [shape = 'u8[16384]{0}', space=vmem, size = 0x4000, scoped, tag = 'output window, operand 0, single buffered']
    #allocation4 [shape = 's32[1]{0}', space=sflag, size = 0x4, scoped, tag = 'scoped memory for tpu_custom_call.1']
    %17 = vsyncpa [#allocation4], 0
    // Predicated region
    $region2: #{tpu_custom_call.1} parent=1 // pred_check
      _
    $region3: #{tpu_custom_call.1} parent=1 // pred_check_branch
      %19 = sbr.rel (0) target = $region5
    $region4: #{tpu_custom_call.1} parent=1 // pred_region
      _
    $region5: #{tpu_custom_call.1} parent=1 // pred_fallthru
      _
    // Predicated region
    $region6: #{tpu_custom_call.1} parent=1 // pred_check
      _
    $region7: #{tpu_custom_call.1} parent=1 // pred_check_branch
      %21 = sbr.rel (0) target = $region9
    $region8: #{tpu_custom_call.1} parent=1 // pred_region
      _
    $region9: #{tpu_custom_call.1} parent=1 // pred_fallthru
      _
    // Predicated region
    $region10: #{tpu_custom_call.1} parent=1 // pred_check
      _
    $region11: #{tpu_custom_call.1} parent=1 // pred_check_branch
      %23 = sbr.rel (0) target = $region13
    $region12: #{tpu_custom_call.1} parent=1 // pred_region
      _
    $region13: #{tpu_custom_call.1} parent=1 // pred_fallthru
      _
    // Predicated region
    $region14: #{tpu_custom_call.1} parent=1 // pred_check
      _
    $region15: #{tpu_custom_call.1} parent=1 // pred_check_branch
      %25 = sbr.rel (0) target = $region17
    $region16: #{tpu_custom_call.1} parent=1 // pred_region
      _
    $region17: #{tpu_custom_call.1} parent=1 // pred_fallthru
      _
    // Predicated region
    $region18: #{tpu_custom_call.1} parent=1 // pred_check
      _
    $region19: #{tpu_custom_call.1} parent=1 // pred_check_branch
      %27 = sbr.rel (0) target = $region21
    $region20: #{tpu_custom_call.1} parent=1 // pred_region
      _
    $region21: #{tpu_custom_call.1} parent=1 // pred_fallthru
      _
    // Predicated region
    $region22: #{tpu_custom_call.1} parent=1 // pred_check
      _
    $region23: #{tpu_custom_call.1} parent=1 // pred_check_branch
      %29 = sbr.rel (0) target = $region25
    $region24: #{tpu_custom_call.1} parent=1 // pred_region
      _
    $region25: #{tpu_custom_call.1} parent=1 // pred_fallthru
      _
    // Predicated region
    $region26: #{tpu_custom_call.1} parent=1 // pred_check
      _
    $region27: #{tpu_custom_call.1} parent=1 // pred_check_branch
      %31 = sbr.rel (0) target = $region29
    $region28: #{tpu_custom_call.1} parent=1 // pred_region
      _
    $region29: #{tpu_custom_call.1} parent=1 // pred_fallthru
      _
    // Predicated region
    $region30: #{tpu_custom_call.1} parent=1 // pred_check
      _
    $region31: #{tpu_custom_call.1} parent=1 // pred_check_branch
      %33 = sbr.rel (0) target = $region33
    $region32: #{tpu_custom_call.1} parent=1 // pred_region
      _
    $region33: #{tpu_custom_call.1} parent=1 // pred_fallthru
      _
    // Predicated region
    $region34: #{tpu_custom_call.1} parent=1 // pred_check
      _
    $region35: #{tpu_custom_call.1} parent=1 // pred_check_branch
      %35 = sbr.rel (0) target = $region37
    $region36: #{tpu_custom_call.1} parent=1 // pred_region
      _
    $region37: #{tpu_custom_call.1} parent=1 // pred_fallthru
      _
    // Predicated region
    $region38: #{tpu_custom_call.1} parent=1 // pred_check
      _
    $region39: #{tpu_custom_call.1} parent=1 // pred_check_branch
      %37 = sbr.rel (0) target = $region41
    $region40: #{tpu_custom_call.1} parent=1 // pred_region
      _
    $region41: #{tpu_custom_call.1} parent=1 // pred_fallthru
      _
    // Predicated region
    $region42: #{tpu_custom_call.1} parent=1 // pred_check
      _
    $region43: #{tpu_custom_call.1} parent=1 // pred_check_branch
      %39 = sbr.rel (0) target = $region45
    $region44: #{tpu_custom_call.1} parent=1 // pred_region
      _
    $region45: #{tpu_custom_call.1} parent=1 // pred_fallthru
      _
    // Predicated region
    $region46: #{tpu_custom_call.1} parent=1 // pred_check
      _
    $region47: #{tpu_custom_call.1} parent=1 // pred_check_branch
      %41 = sbr.rel (0) target = $region49
    $region48: #{tpu_custom_call.1} parent=1 // pred_region
      _
    $region49: #{tpu_custom_call.1} parent=1 // pred_fallthru
      _
    %v43 = vld [vmem:[%s0] sm:$0xff]
    %v44 = vld [vmem:[%s0 + $0x8] sm:$0xff]
    %v45 = vld [vmem:[%s0 + $0x10] sm:$0xff]
    %v46 = vld [vmem:[%s0 + $0x18] sm:$0xff]
    %v47 = vpack.c.bf16 %v43, %v43
    %v48 = vpack.c.bf16 %v44, %v44
    %v49 = vpack.c.bf16 %v45, %v45
    %v50 = vpack.c.bf16 %v46, %v46
    %v51 = vld [vmem:[%s2] sm:$0xf]
    %v52 = vld [vmem:[%s2 + $0x4] sm:$0xf]
    %v53 = vld [vmem:[%s2 + $0x8] sm:$0xf]
    %v54 = vld [vmem:[%s2 + $0xc] sm:$0xf]
    %v55 = vld [vmem:[%s3] sm:$0xff]
    %v56 = vld [vmem:[%s3 + $0x8] sm:$0xff]
    %v57 = vld [vmem:[%s3 + $0x10] sm:$0xff]
    %v58 = vld [vmem:[%s3 + $0x18] sm:$0xff]
    %60 = vset.pattern.permute.xlu0 0
    %61 = vperm.xlu0 %60, %v55
    %v62 = vpop.permute.xlu0 %61
    %65 = vset.pattern.permute.xlu0 0
    %66 = vperm.xlu0 %65, %v56
    %v67 = vpop.permute.xlu0 %66
    %70 = vset.pattern.permute.xlu0 0
    %71 = vperm.xlu0 %70, %v57
    %v72 = vpop.permute.xlu0 %71
    %75 = vset.pattern.permute.xlu0 0
    %76 = vperm.xlu0 %75, %v58
    %v77 = vpop.permute.xlu0 %76
    %v83 = vunpack.c.l.b16 %v51
    %v84 = vunpack.c.l.b16 %v52
    %v85 = vunpack.c.l.b16 %v53
    %v86 = vunpack.c.l.b16 %v54
    %v87 = vpack.c.b16 %v84, %v83
    %v88 = vpack.c.b16 %v86, %v85
    %vm89 = vcmask 64512
    %v91 = vsel %vm89, %v87, 0
    %v94 = vsel %vm89, %v88, 0
    %vm96 = vcmask 1043456
    %v98 = vsel %vm96, %v47, 0
    %v101 = vsel %vm96, %v48, 0
    %v104 = vsel %vm96, %v49, 0
    %v107 = vsel %vm96, %v50, 0
    %109 = vmatpush.bf16.msra.mxu0 0
    %110 = vmatpush.bf16.msra.mxu0 0
    %111 = vmatpush.bf16.msra.mxu0 0
    %112 = vmatpush.bf16.msra.mxu0 0
    %113 = vmatpush.bf16.msra.mxu0 0
    %114 = vmatpush.bf16.msra.mxu0 0
    %115 = vmatpush.bf16.msra.mxu0 0
    %116 = vmatpush.bf16.msra.mxu0 %v98
    %117 = vmatmul.bf16.gmra.mxu0 %v91
    %v118 = vpop.f32.mrf.mxu0
    %v119 = vadd.f32 %v62, %v118
    %v120 = vpop.f32.mrf.mxu0
    %v121 = vadd.f32 %v67, %v120
    %122 = vmatmul.bf16.gmra.mxu0 %v94
    %v123 = vpop.f32.mrf.mxu0
    %v124 = vadd.f32 %v72, %v123
    %v125 = vpop.f32.mrf.mxu0
    %v126 = vadd.f32 %v77, %v125
    %127 = vdwg.mxu0
    %128 = vmatpush.bf16.msra.mxu0 0
    %129 = vmatpush.bf16.msra.mxu0 0
    %130 = vmatpush.bf16.msra.mxu0 0
    %131 = vmatpush.bf16.msra.mxu0 0
    %132 = vmatpush.bf16.msra.mxu0 0
    %133 = vmatpush.bf16.msra.mxu0 0
    %134 = vmatpush.bf16.msra.mxu0 0
    %135 = vmatpush.bf16.msra.mxu0 %v101
    %136 = vmatmul.bf16.gmra.mxu0 %v91
    %v137 = vpop.f32.mrf.mxu0
    %v138 = vadd.f32 %v62, %v137
    %v139 = vpop.f32.mrf.mxu0
    %v140 = vadd.f32 %v67, %v139
    %141 = vmatmul.bf16.gmra.mxu0 %v94
    %v142 = vpop.f32.mrf.mxu0
    %v143 = vadd.f32 %v72, %v142
    %v144 = vpop.f32.mrf.mxu0
    %v145 = vadd.f32 %v77, %v144
    %146 = vdwg.mxu0
    %147 = vmatpush.bf16.msra.mxu0 0
    %148 = vmatpush.bf16.msra.mxu0 0
    %149 = vmatpush.bf16.msra.mxu0 0
    %150 = vmatpush.bf16.msra.mxu0 0
    %151 = vmatpush.bf16.msra.mxu0 0
    %152 = vmatpush.bf16.msra.mxu0 0
    %153 = vmatpush.bf16.msra.mxu0 0
    %154 = vmatpush.bf16.msra.mxu0 %v104
    %155 = vmatmul.bf16.gmra.mxu0 %v91
    %v156 = vpop.f32.mrf.mxu0
    %v157 = vadd.f32 %v62, %v156
    %v158 = vpop.f32.mrf.mxu0
    %v159 = vadd.f32 %v67, %v158
    %160 = vmatmul.bf16.gmra.mxu0 %v94
    %v161 = vpop.f32.mrf.mxu0
    %v162 = vadd.f32 %v72, %v161
    %v163 = vpop.f32.mrf.mxu0
    %v164 = vadd.f32 %v77, %v163
    %165 = vdwg.mxu0
    %166 = vmatpush.bf16.msra.mxu0 0
    %167 = vmatpush.bf16.msra.mxu0 0
    %168 = vmatpush.bf16.msra.mxu0 0
    %169 = vmatpush.bf16.msra.mxu0 0
    %170 = vmatpush.bf16.msra.mxu0 0
    %171 = vmatpush.bf16.msra.mxu0 0
    %172 = vmatpush.bf16.msra.mxu0 0
    %173 = vmatpush.bf16.msra.mxu0 %v107
    %174 = vmatmul.bf16.gmra.mxu0 %v91
    %v175 = vpop.f32.mrf.mxu0
    %v176 = vadd.f32 %v62, %v175
    %v177 = vpop.f32.mrf.mxu0
    %v178 = vadd.f32 %v67, %v177
    %179 = vmatmul.bf16.gmra.mxu0 %v94
    %v180 = vpop.f32.mrf.mxu0
    %v181 = vadd.f32 %v72, %v180
    %v182 = vpop.f32.mrf.mxu0
    %v183 = vadd.f32 %v77, %v182
    %184 = vdwg.mxu0
    %v185 = vsub.f32 0.0, %v119
    %v186 = vsub.f32 0.0, %v138
    %v187 = vsub.f32 0.0, %v157
    %v188 = vsub.f32 0.0, %v176
    %v189 = vsub.f32 0.0, %v121
    %v190 = vsub.f32 0.0, %v140
    %v191 = vsub.f32 0.0, %v159
    %v192 = vsub.f32 0.0, %v178
    %v193 = vsub.f32 0.0, %v124
    %v194 = vsub.f32 0.0, %v143
    %v195 = vsub.f32 0.0, %v162
    %v196 = vsub.f32 0.0, %v181
    %v197 = vsub.f32 0.0, %v126
    %v198 = vsub.f32 0.0, %v145
    %v199 = vsub.f32 0.0, %v164
    %v200 = vsub.f32 0.0, %v183
    %v201 = vmul.f32 %v185, 1.442695
    %v202 = vpow.pop %v201
    %v203 = vmul.f32 %v186, 1.442695
    %v204 = vpow.pop %v203
    %v205 = vmul.f32 %v187, 1.442695
    %v206 = vpow.pop %v205
    %v207 = vmul.f32 %v188, 1.442695
    %v208 = vpow.pop %v207
    %v209 = vmul.f32 %v189, 1.442695
    %v210 = vpow.pop %v209
    %v211 = vmul.f32 %v190, 1.442695
    %v212 = vpow.pop %v211
    %v213 = vmul.f32 %v191, 1.442695
    %v214 = vpow.pop %v213
    %v215 = vmul.f32 %v192, 1.442695
    %v216 = vpow.pop %v215
    %v217 = vmul.f32 %v193, 1.442695
    %v218 = vpow.pop %v217
    %v219 = vmul.f32 %v194, 1.442695
    %v220 = vpow.pop %v219
    %v221 = vmul.f32 %v195, 1.442695
    %v222 = vpow.pop %v221
    %v223 = vmul.f32 %v196, 1.442695
    %v224 = vpow.pop %v223
    %v225 = vmul.f32 %v197, 1.442695
    %v226 = vpow.pop %v225
    %v227 = vmul.f32 %v198, 1.442695
    %v228 = vpow.pop %v227
    %v229 = vmul.f32 %v199, 1.442695
    %v230 = vpow.pop %v229
    %v231 = vmul.f32 %v200, 1.442695
    %v232 = vpow.pop %v231
    %v233 = vadd.f32 %v202, 1.0
    %v234 = vadd.f32 %v204, 1.0
    %v235 = vadd.f32 %v206, 1.0
    %v236 = vadd.f32 %v208, 1.0
    %v237 = vadd.f32 %v210, 1.0
    %v238 = vadd.f32 %v212, 1.0
    %v239 = vadd.f32 %v214, 1.0
    %v240 = vadd.f32 %v216, 1.0
    %v241 = vadd.f32 %v218, 1.0
    %v242 = vadd.f32 %v220, 1.0
    %v243 = vadd.f32 %v222, 1.0
    %v244 = vadd.f32 %v224, 1.0
    %v245 = vadd.f32 %v226, 1.0
    %v246 = vadd.f32 %v228, 1.0
    %v247 = vadd.f32 %v230, 1.0
    %v248 = vadd.f32 %v232, 1.0
    %v249 = vrcp.pop %v233
    %v250 = vrcp.pop %v234
    %v251 = vrcp.pop %v235
    %v252 = vrcp.pop %v236
    %v253 = vrcp.pop %v237
    %v254 = vrcp.pop %v238
    %v255 = vrcp.pop %v239
    %v256 = vrcp.pop %v240
    %v257 = vrcp.pop %v241
    %v258 = vrcp.pop %v242
    %v259 = vrcp.pop %v243
    %v260 = vrcp.pop %v244
    %v261 = vrcp.pop %v245
    %v262 = vrcp.pop %v246
    %v263 = vrcp.pop %v247
    %v264 = vrcp.pop %v248
    %v265 = vmul.f32 %v119, %v249
    %v266 = vmul.f32 %v138, %v250
    %v267 = vmul.f32 %v157, %v251
    %v268 = vmul.f32 %v176, %v252
    %v269 = vmul.f32 %v121, %v253
    %v270 = vmul.f32 %v140, %v254
    %v271 = vmul.f32 %v159, %v255
    %v272 = vmul.f32 %v178, %v256
    %v273 = vmul.f32 %v124, %v257
    %v274 = vmul.f32 %v143, %v258
    %v275 = vmul.f32 %v162, %v259
    %v276 = vmul.f32 %v181, %v260
    %v277 = vmul.f32 %v126, %v261
    %v278 = vmul.f32 %v145, %v262
    %v279 = vmul.f32 %v164, %v263
    %v280 = vmul.f32 %v183, %v264
    %281 = vst [vmem:[#allocation2] sm:$0xff] 0.0
    %282 = vst [vmem:[#allocation2 + $0x30] sm:$0xff] 0.0
    %283 = vst [vmem:[#allocation2 + $0x60] sm:$0xff] 0.0
    %284 = vst [vmem:[#allocation2 + $0x90] sm:$0xff] 0.0
    %285 = vst [vmem:[#allocation2 + $0x28] sm:$0xff] 0.0
    %286 = vst [vmem:[#allocation2 + $0x58] sm:$0xff] 0.0
    %287 = vst [vmem:[#allocation2 + $0x88] sm:$0xff] 0.0
    %288 = vst [vmem:[#allocation2 + $0xb8] sm:$0xff] 0.0
    %289 = vst [vmem:[#allocation2 + $0x8] sm:$0xff] %v265
    %290 = vst [vmem:[#allocation2 + $0x10] sm:$0xff] %v266
    %291 = vst [vmem:[#allocation2 + $0x18] sm:$0xff] %v267
    %292 = vst [vmem:[#allocation2 + $0x20] sm:$0xff] %v268
    %293 = vst [vmem:[#allocation2 + $0x38] sm:$0xff] %v269
    %294 = vst [vmem:[#allocation2 + $0x40] sm:$0xff] %v270
    %295 = vst [vmem:[#allocation2 + $0x48] sm:$0xff] %v271
    %296 = vst [vmem:[#allocation2 + $0x50] sm:$0xff] %v272
    %297 = vst [vmem:[#allocation2 + $0x68] sm:$0xff] %v273
    %298 = vst [vmem:[#allocation2 + $0x70] sm:$0xff] %v274
    %299 = vst [vmem:[#allocation2 + $0x78] sm:$0xff] %v275
    %300 = vst [vmem:[#allocation2 + $0x80] sm:$0xff] %v276
    %301 = vst [vmem:[#allocation2 + $0x98] sm:$0xff] %v277
    %302 = vst [vmem:[#allocation2 + $0xa0] sm:$0xff] %v278
    %303 = vst [vmem:[#allocation2 + $0xa8] sm:$0xff] %v279
    %304 = vst [vmem:[#allocation2 + $0xb0] sm:$0xff] %v280
    %v305 = vld [vmem:[#allocation2] sm:$0xff]
    %v306 = vld [vmem:[#allocation2 + $0x8] sm:$0xff]
    %v307 = vld [vmem:[#allocation2 + $0x10] sm:$0xff]
    %v308 = vld [vmem:[#allocation2 + $0x18] sm:$0xff]
    %v309 = vld [vmem:[#allocation2 + $0x20] sm:$0xff]
    %v310 = vld [vmem:[#allocation2 + $0x30] sm:$0xff]
    %v311 = vld [vmem:[#allocation2 + $0x38] sm:$0xff]
    %v312 = vld [vmem:[#allocation2 + $0x40] sm:$0xff]
    %v313 = vld [vmem:[#allocation2 + $0x48] sm:$0xff]
    %v314 = vld [vmem:[#allocation2 + $0x50] sm:$0xff]
    %v315 = vld [vmem:[#allocation2 + $0x60] sm:$0xff]
    %v316 = vld [vmem:[#allocation2 + $0x68] sm:$0xff]
    %v317 = vld [vmem:[#allocation2 + $0x70] sm:$0xff]
    %v318 = vld [vmem:[#allocation2 + $0x78] sm:$0xff]
    %v319 = vld [vmem:[#allocation2 + $0x80] sm:$0xff]
    %v320 = vld [vmem:[#allocation2 + $0x90] sm:$0xff]
    %v321 = vld [vmem:[#allocation2 + $0x98] sm:$0xff]
    %v322 = vld [vmem:[#allocation2 + $0xa0] sm:$0xff]
    %v323 = vld [vmem:[#allocation2 + $0xa8] sm:$0xff]
    %v324 = vld [vmem:[#allocation2 + $0xb0] sm:$0xff]
    %v325 = vld [vmem:[%s1] ss:$8 sm:$0xf]
    %v327 = vperm.slane %v325, 0
    %v328 = vperm.slane %v325, 1
    %v329 = vperm.slane %v325, 2
    %v330 = vperm.slane %v325, 3
    %331 = vrot.lane.b32.xlu0 %v327, 111
    %v332 = vpop.permute.xlu0 %331
    %333 = vrot.lane.b32.xlu0 %v328, 111
    %v334 = vpop.permute.xlu0 %333
    %335 = vrot.lane.b32.xlu0 %v329, 111
    %v336 = vpop.permute.xlu0 %335
    %337 = vrot.lane.b32.xlu0 %v330, 111
    %v338 = vpop.permute.xlu0 %337
    %vm339 = vcmask 908288
    %v340 = vsel %vm339, %v332, %v334
    %v341 = vsel %vm339, %v334, %v336
    %v342 = vsel %vm339, %v336, %v338
    %v348 = vmul.f32 %v305, %v332
    %v349 = vmul.f32 %v306, %v340
    %v350 = vmul.f32 %v307, %v341
    %v351 = vmul.f32 %v308, %v342
    %v352 = vmul.f32 %v309, %v338
    %v353 = vmul.f32 %v310, %v332
    %v354 = vmul.f32 %v311, %v340
    %v355 = vmul.f32 %v312, %v341
    %v356 = vmul.f32 %v313, %v342
    %v357 = vmul.f32 %v314, %v338
    %v358 = vmul.f32 %v315, %v332
    %v359 = vmul.f32 %v316, %v340
    %v360 = vmul.f32 %v317, %v341
    %v361 = vmul.f32 %v318, %v342
    %v362 = vmul.f32 %v319, %v338
    %v363 = vmul.f32 %v320, %v332
    %v364 = vmul.f32 %v321, %v340
    %v365 = vmul.f32 %v322, %v341
    %v366 = vmul.f32 %v323, %v342
    %v367 = vmul.f32 %v324, %v338
    %v368 = vld [vmem:[%s4] sm:$0xff]
    %v369 = vld [vmem:[%s4 + $0x8] sm:$0xff]
    %v370 = vld [vmem:[%s4 + $0x10] sm:$0xff]
    %v371 = vld [vmem:[%s4 + $0x18] sm:$0xff]
    %373 = vset.pattern.permute.xlu0 0
    %374 = vperm.xlu0 %373, %v368
    %v375 = vpop.permute.xlu0 %374
    %378 = vset.pattern.permute.xlu0 0
    %379 = vperm.xlu0 %378, %v369
    %v380 = vpop.permute.xlu0 %379
    %383 = vset.pattern.permute.xlu0 0
    %384 = vperm.xlu0 %383, %v370
    %v385 = vpop.permute.xlu0 %384
    %388 = vset.pattern.permute.xlu0 0
    %389 = vperm.xlu0 %388, %v371
    %v390 = vpop.permute.xlu0 %389
    %v392 = vmul.f32 %v348, %v375
    %v393 = vmul.f32 %v349, %v375
    %v394 = vmul.f32 %v350, %v375
    %v395 = vmul.f32 %v351, %v375
    %v396 = vmul.f32 %v352, %v375
    %v397 = vmul.f32 %v353, %v380
    %v398 = vmul.f32 %v354, %v380
    %v399 = vmul.f32 %v355, %v380
    %v400 = vmul.f32 %v356, %v380
    %v401 = vmul.f32 %v357, %v380
    %v402 = vmul.f32 %v358, %v385
    %v403 = vmul.f32 %v359, %v385
    %v404 = vmul.f32 %v360, %v385
    %v405 = vmul.f32 %v361, %v385
    %v406 = vmul.f32 %v362, %v385
    %v407 = vmul.f32 %v363, %v390
    %v408 = vmul.f32 %v364, %v390
    %v409 = vmul.f32 %v365, %v390
    %v410 = vmul.f32 %v366, %v390
    %v411 = vmul.f32 %v367, %v390
    %v412 = vadd.f32 %v392, 0.0
    %v413 = vadd.f32 %v393, 0.0
    %v414 = vadd.f32 %v394, 0.0
    %v415 = vadd.f32 %v395, 0.0
    %v416 = vadd.f32 %v396, 0.0
    %v417 = vadd.f32 %v397, 0.0
    %v418 = vadd.f32 %v398, 0.0
    %v419 = vadd.f32 %v399, 0.0
    %v420 = vadd.f32 %v400, 0.0
    %v421 = vadd.f32 %v401, 0.0
    %v422 = vadd.f32 %v402, 0.0
    %v423 = vadd.f32 %v403, 0.0
    %v424 = vadd.f32 %v404, 0.0
    %v425 = vadd.f32 %v405, 0.0
    %v426 = vadd.f32 %v406, 0.0
    %v427 = vadd.f32 %v407, 0.0
    %v428 = vadd.f32 %v408, 0.0
    %v429 = vadd.f32 %v409, 0.0
    %v430 = vadd.f32 %v410, 0.0
    %v431 = vadd.f32 %v411, 0.0
    %s432 = scalar_lea.vmem %s1, 1
    %v433 = vld [vmem:[%s432] ss:$8 sm:$0xf]
    %v435 = vperm.slane %v433, 0
    %v436 = vperm.slane %v433, 1
    %v437 = vperm.slane %v433, 2
    %v438 = vperm.slane %v433, 3
    %439 = vrot.lane.b32.xlu0 %v435, 112
    %v440 = vpop.permute.xlu0 %439
    %441 = vrot.lane.b32.xlu0 %v436, 112
    %v442 = vpop.permute.xlu0 %441
    %443 = vrot.lane.b32.xlu0 %v437, 112
    %v444 = vpop.permute.xlu0 %443
    %445 = vrot.lane.b32.xlu0 %v438, 112
    %v446 = vpop.permute.xlu0 %445
    %vm447 = vcmask 916480
    %v448 = vsel %vm447, %v440, %v442
    %v449 = vsel %vm447, %v442, %v444
    %v450 = vsel %vm447, %v444, %v446
    %v456 = vmul.f32 %v305, %v440
    %v457 = vmul.f32 %v306, %v448
    %v458 = vmul.f32 %v307, %v449
    %v459 = vmul.f32 %v308, %v450
    %v460 = vmul.f32 %v309, %v446
    %v461 = vmul.f32 %v310, %v440
    %v462 = vmul.f32 %v311, %v448
    %v463 = vmul.f32 %v312, %v449
    %v464 = vmul.f32 %v313, %v450
    %v465 = vmul.f32 %v314, %v446
    %v466 = vmul.f32 %v315, %v440
    %v467 = vmul.f32 %v316, %v448
    %v468 = vmul.f32 %v317, %v449
    %v469 = vmul.f32 %v318, %v450
    %v470 = vmul.f32 %v319, %v446
    %v471 = vmul.f32 %v320, %v440
    %v472 = vmul.f32 %v321, %v448
    %v473 = vmul.f32 %v322, %v449
    %v474 = vmul.f32 %v323, %v450
    %v475 = vmul.f32 %v324, %v446
    %476 = vset.pattern.permute.xlu0 1
    %477 = vperm.xlu0 %476, %v368
    %v478 = vpop.permute.xlu0 %477
    %480 = vset.pattern.permute.xlu0 1
    %481 = vperm.xlu0 %480, %v369
    %v482 = vpop.permute.xlu0 %481
    %484 = vset.pattern.permute.xlu0 1
    %485 = vperm.xlu0 %484, %v370
    %v486 = vpop.permute.xlu0 %485
    %488 = vset.pattern.permute.xlu0 1
    %489 = vperm.xlu0 %488, %v371
    %v490 = vpop.permute.xlu0 %489
    %v492 = vmul.f32 %v456, %v478
    %v493 = vmul.f32 %v457, %v478
    %v494 = vmul.f32 %v458, %v478
    %v495 = vmul.f32 %v459, %v478
    %v496 = vmul.f32 %v460, %v478
    %v497 = vmul.f32 %v461, %v482
    %v498 = vmul.f32 %v462, %v482
    %v499 = vmul.f32 %v463, %v482
    %v500 = vmul.f32 %v464, %v482
    %v501 = vmul.f32 %v465, %v482
    %v502 = vmul.f32 %v466, %v486
    %v503 = vmul.f32 %v467, %v486
    %v504 = vmul.f32 %v468, %v486
    %v505 = vmul.f32 %v469, %v486
    %v506 = vmul.f32 %v470, %v486
    %v507 = vmul.f32 %v471, %v490
    %v508 = vmul.f32 %v472, %v490
    %v509 = vmul.f32 %v473, %v490
    %v510 = vmul.f32 %v474, %v490
    %v511 = vmul.f32 %v475, %v490
    %532 = vrot.lane.b32.xlu0 %v492, 127
    %v533 = vpop.permute.xlu0 %532
    %534 = vrot.lane.b32.xlu0 %v493, 127
    %v535 = vpop.permute.xlu0 %534
    %536 = vrot.lane.b32.xlu0 %v494, 127
    %v537 = vpop.permute.xlu0 %536
    %538 = vrot.lane.b32.xlu0 %v495, 127
    %v539 = vpop.permute.xlu0 %538
    %540 = vrot.lane.b32.xlu0 %v496, 127
    %v541 = vpop.permute.xlu0 %540
    %542 = vrot.lane.b32.xlu0 %v497, 127
    %v543 = vpop.permute.xlu0 %542
    %544 = vrot.lane.b32.xlu0 %v498, 127
    %v545 = vpop.permute.xlu0 %544
    %546 = vrot.lane.b32.xlu0 %v499, 127
    %v547 = vpop.permute.xlu0 %546
    %548 = vrot.lane.b32.xlu0 %v500, 127
    %v549 = vpop.permute.xlu0 %548
    %550 = vrot.lane.b32.xlu0 %v501, 127
    %v551 = vpop.permute.xlu0 %550
    %552 = vrot.lane.b32.xlu0 %v502, 127
    %v553 = vpop.permute.xlu0 %552
    %554 = vrot.lane.b32.xlu0 %v503, 127
    %v555 = vpop.permute.xlu0 %554
    %556 = vrot.lane.b32.xlu0 %v504, 127
    %v557 = vpop.permute.xlu0 %556
    %558 = vrot.lane.b32.xlu0 %v505, 127
    %v559 = vpop.permute.xlu0 %558
    %560 = vrot.lane.b32.xlu0 %v506, 127
    %v561 = vpop.permute.xlu0 %560
    %562 = vrot.lane.b32.xlu0 %v507, 127
    %v563 = vpop.permute.xlu0 %562
    %564 = vrot.lane.b32.xlu0 %v508, 127
    %v565 = vpop.permute.xlu0 %564
    %566 = vrot.lane.b32.xlu0 %v509, 127
    %v567 = vpop.permute.xlu0 %566
    %568 = vrot.lane.b32.xlu0 %v510, 127
    %v569 = vpop.permute.xlu0 %568
    %570 = vrot.lane.b32.xlu0 %v511, 127
    %v571 = vpop.permute.xlu0 %570
    %vm572 = vcmask 1039360
    %v573 = vsel %vm572, %v533, %v535
    %v574 = vsel %vm572, %v535, %v537
    %v575 = vsel %vm572, %v537, %v539
    %v576 = vsel %vm572, %v539, %v541
    %v577 = vsel %vm572, %v543, %v545
    %v578 = vsel %vm572, %v545, %v547
    %v579 = vsel %vm572, %v547, %v549
    %v580 = vsel %vm572, %v549, %v551
    %v581 = vsel %vm572, %v553, %v555
    %v582 = vsel %vm572, %v555, %v557
    %v583 = vsel %vm572, %v557, %v559
    %v584 = vsel %vm572, %v559, %v561
    %v585 = vsel %vm572, %v563, %v565
    %v586 = vsel %vm572, %v565, %v567
    %v587 = vsel %vm572, %v567, %v569
    %v588 = vsel %vm572, %v569, %v571
    %v609 = vadd.f32 %v412, %v573
    %v610 = vadd.f32 %v413, %v574
    %v611 = vadd.f32 %v414, %v575
    %v612 = vadd.f32 %v415, %v576
    %v613 = vadd.f32 %v416, %v541
    %v614 = vadd.f32 %v417, %v577
    %v615 = vadd.f32 %v418, %v578
    %v616 = vadd.f32 %v419, %v579
    %v617 = vadd.f32 %v420, %v580
    %v618 = vadd.f32 %v421, %v551
    %v619 = vadd.f32 %v422, %v581
    %v620 = vadd.f32 %v423, %v582
    %v621 = vadd.f32 %v424, %v583
    %v622 = vadd.f32 %v425, %v584
    %v623 = vadd.f32 %v426, %v561
    %v624 = vadd.f32 %v427, %v585
    %v625 = vadd.f32 %v428, %v586
    %v626 = vadd.f32 %v429, %v587
    %v627 = vadd.f32 %v430, %v588
    %v628 = vadd.f32 %v431, %v571
    %s629 = scalar_lea.vmem %s1, 2
    %v630 = vld [vmem:[%s629] ss:$8 sm:$0xf]
    %v632 = vperm.slane %v630, 0
    %v633 = vperm.slane %v630, 1
    %v634 = vperm.slane %v630, 2
    %v635 = vperm.slane %v630, 3
    %636 = vrot.lane.b32.xlu0 %v632, 113
    %v637 = vpop.permute.xlu0 %636
    %638 = vrot.lane.b32.xlu0 %v633, 113
    %v639 = vpop.permute.xlu0 %638
    %640 = vrot.lane.b32.xlu0 %v634, 113
    %v641 = vpop.permute.xlu0 %640
    %642 = vrot.lane.b32.xlu0 %v635, 113
    %v643 = vpop.permute.xlu0 %642
    %vm644 = vcmask 924672
    %v645 = vsel %vm644, %v637, %v639
    %v646 = vsel %vm644, %v639, %v641
    %v647 = vsel %vm644, %v641, %v643
    %v653 = vmul.f32 %v305, %v637
    %v654 = vmul.f32 %v306, %v645
    %v655 = vmul.f32 %v307, %v646
    %v656 = vmul.f32 %v308, %v647
    %v657 = vmul.f32 %v309, %v643
    %v658 = vmul.f32 %v310, %v637
    %v659 = vmul.f32 %v311, %v645
    %v660 = vmul.f32 %v312, %v646
    %v661 = vmul.f32 %v313, %v647
    %v662 = vmul.f32 %v314, %v643
    %v663 = vmul.f32 %v315, %v637
    %v664 = vmul.f32 %v316, %v645
    %v665 = vmul.f32 %v317, %v646
    %v666 = vmul.f32 %v318, %v647
    %v667 = vmul.f32 %v319, %v643
    %v668 = vmul.f32 %v320, %v637
    %v669 = vmul.f32 %v321, %v645
    %v670 = vmul.f32 %v322, %v646
    %v671 = vmul.f32 %v323, %v647
    %v672 = vmul.f32 %v324, %v643
    %673 = vset.pattern.permute.xlu0 2
    %674 = vperm.xlu0 %673, %v368
    %v675 = vpop.permute.xlu0 %674
    %677 = vset.pattern.permute.xlu0 2
    %678 = vperm.xlu0 %677, %v369
    %v679 = vpop.permute.xlu0 %678
    %681 = vset.pattern.permute.xlu0 2
    %682 = vperm.xlu0 %681, %v370
    %v683 = vpop.permute.xlu0 %682
    %685 = vset.pattern.permute.xlu0 2
    %686 = vperm.xlu0 %685, %v371
    %v687 = vpop.permute.xlu0 %686
    %v689 = vmul.f32 %v653, %v675
    %v690 = vmul.f32 %v654, %v675
    %v691 = vmul.f32 %v655, %v675
    %v692 = vmul.f32 %v656, %v675
    %v693 = vmul.f32 %v657, %v675
    %v694 = vmul.f32 %v658, %v679
    %v695 = vmul.f32 %v659, %v679
    %v696 = vmul.f32 %v660, %v679
    %v697 = vmul.f32 %v661, %v679
    %v698 = vmul.f32 %v662, %v679
    %v699 = vmul.f32 %v663, %v683
    %v700 = vmul.f32 %v664, %v683
    %v701 = vmul.f32 %v665, %v683
    %v702 = vmul.f32 %v666, %v683
    %v703 = vmul.f32 %v667, %v683
    %v704 = vmul.f32 %v668, %v687
    %v705 = vmul.f32 %v669, %v687
    %v706 = vmul.f32 %v670, %v687
    %v707 = vmul.f32 %v671, %v687
    %v708 = vmul.f32 %v672, %v687
    %729 = vrot.lane.b32.xlu0 %v689, 126
    %v730 = vpop.permute.xlu0 %729
    %731 = vrot.lane.b32.xlu0 %v690, 126
    %v732 = vpop.permute.xlu0 %731
    %733 = vrot.lane.b32.xlu0 %v691, 126
    %v734 = vpop.permute.xlu0 %733
    %735 = vrot.lane.b32.xlu0 %v692, 126
    %v736 = vpop.permute.xlu0 %735
    %737 = vrot.lane.b32.xlu0 %v693, 126
    %v738 = vpop.permute.xlu0 %737
    %739 = vrot.lane.b32.xlu0 %v694, 126
    %v740 = vpop.permute.xlu0 %739
    %741 = vrot.lane.b32.xlu0 %v695, 126
    %v742 = vpop.permute.xlu0 %741
    %743 = vrot.lane.b32.xlu0 %v696, 126
    %v744 = vpop.permute.xlu0 %743
    %745 = vrot.lane.b32.xlu0 %v697, 126
    %v746 = vpop.permute.xlu0 %745
    %747 = vrot.lane.b32.xlu0 %v698, 126
    %v748 = vpop.permute.xlu0 %747
    %749 = vrot.lane.b32.xlu0 %v699, 126
    %v750 = vpop.permute.xlu0 %749
    %751 = vrot.lane.b32.xlu0 %v700, 126
    %v752 = vpop.permute.xlu0 %751
    %753 = vrot.lane.b32.xlu0 %v701, 126
    %v754 = vpop.permute.xlu0 %753
    %755 = vrot.lane.b32.xlu0 %v702, 126
    %v756 = vpop.permute.xlu0 %755
    %757 = vrot.lane.b32.xlu0 %v703, 126
    %v758 = vpop.permute.xlu0 %757
    %759 = vrot.lane.b32.xlu0 %v704, 126
    %v760 = vpop.permute.xlu0 %759
    %761 = vrot.lane.b32.xlu0 %v705, 126
    %v762 = vpop.permute.xlu0 %761
    %763 = vrot.lane.b32.xlu0 %v706, 126
    %v764 = vpop.permute.xlu0 %763
    %765 = vrot.lane.b32.xlu0 %v707, 126
    %v766 = vpop.permute.xlu0 %765
    %767 = vrot.lane.b32.xlu0 %v708, 126
    %v768 = vpop.permute.xlu0 %767
    %vm769 = vcmask 1031168
    %v770 = vsel %vm769, %v730, %v732
    %v771 = vsel %vm769, %v732, %v734
    %v772 = vsel %vm769, %v734, %v736
    %v773 = vsel %vm769, %v736, %v738
    %v774 = vsel %vm769, %v740, %v742
    %v775 = vsel %vm769, %v742, %v744
    %v776 = vsel %vm769, %v744, %v746
    %v777 = vsel %vm769, %v746, %v748
    %v778 = vsel %vm769, %v750, %v752
    %v779 = vsel %vm769, %v752, %v754
    %v780 = vsel %vm769, %v754, %v756
    %v781 = vsel %vm769, %v756, %v758
    %v782 = vsel %vm769, %v760, %v762
    %v783 = vsel %vm769, %v762, %v764
    %v784 = vsel %vm769, %v764, %v766
    %v785 = vsel %vm769, %v766, %v768
    %v806 = vadd.f32 %v609, %v770
    %v807 = vadd.f32 %v610, %v771
    %v808 = vadd.f32 %v611, %v772
    %v809 = vadd.f32 %v612, %v773
    %v810 = vadd.f32 %v613, %v738
    %v811 = vadd.f32 %v614, %v774
    %v812 = vadd.f32 %v615, %v775
    %v813 = vadd.f32 %v616, %v776
    %v814 = vadd.f32 %v617, %v777
    %v815 = vadd.f32 %v618, %v748
    %v816 = vadd.f32 %v619, %v778
    %v817 = vadd.f32 %v620, %v779
    %v818 = vadd.f32 %v621, %v780
    %v819 = vadd.f32 %v622, %v781
    %v820 = vadd.f32 %v623, %v758
    %v821 = vadd.f32 %v624, %v782
    %v822 = vadd.f32 %v625, %v783
    %v823 = vadd.f32 %v626, %v784
    %v824 = vadd.f32 %v627, %v785
    %v825 = vadd.f32 %v628, %v768
    %s826 = scalar_lea.vmem %s1, 3
    %v827 = vld [vmem:[%s826] ss:$8 sm:$0xf]
    %v829 = vperm.slane %v827, 0
    %v830 = vperm.slane %v827, 1
    %v831 = vperm.slane %v827, 2
    %v832 = vperm.slane %v827, 3
    %833 = vrot.lane.b32.xlu0 %v829, 127
    %v834 = vpop.permute.xlu0 %833
    %835 = vrot.lane.b32.xlu0 %v830, 127
    %v836 = vpop.permute.xlu0 %835
    %837 = vrot.lane.b32.xlu0 %v831, 127
    %v838 = vpop.permute.xlu0 %837
    %839 = vrot.lane.b32.xlu0 %v832, 127
    %v840 = vpop.permute.xlu0 %839
    %v841 = vsel %vm572, %v834, %v836
    %v842 = vsel %vm572, %v836, %v838
    %v843 = vsel %vm572, %v838, %v840
    %v849 = vmul.f32 %v305, %v834
    %v850 = vmul.f32 %v306, %v841
    %v851 = vmul.f32 %v307, %v842
    %v852 = vmul.f32 %v308, %v843
    %v853 = vmul.f32 %v309, %v840
    %v854 = vmul.f32 %v310, %v834
    %v855 = vmul.f32 %v311, %v841
    %v856 = vmul.f32 %v312, %v842
    %v857 = vmul.f32 %v313, %v843
    %v858 = vmul.f32 %v314, %v840
    %v859 = vmul.f32 %v315, %v834
    %v860 = vmul.f32 %v316, %v841
    %v861 = vmul.f32 %v317, %v842
    %v862 = vmul.f32 %v318, %v843
    %v863 = vmul.f32 %v319, %v840
    %v864 = vmul.f32 %v320, %v834
    %v865 = vmul.f32 %v321, %v841
    %v866 = vmul.f32 %v322, %v842
    %v867 = vmul.f32 %v323, %v843
    %v868 = vmul.f32 %v324, %v840
    %869 = vset.pattern.permute.xlu0 3
    %870 = vperm.xlu0 %869, %v368
    %v871 = vpop.permute.xlu0 %870
    %873 = vset.pattern.permute.xlu0 3
    %874 = vperm.xlu0 %873, %v369
    %v875 = vpop.permute.xlu0 %874
    %877 = vset.pattern.permute.xlu0 3
    %878 = vperm.xlu0 %877, %v370
    %v879 = vpop.permute.xlu0 %878
    %881 = vset.pattern.permute.xlu0 3
    %882 = vperm.xlu0 %881, %v371
    %v883 = vpop.permute.xlu0 %882
    %v885 = vmul.f32 %v849, %v871
    %v886 = vmul.f32 %v850, %v871
    %v887 = vmul.f32 %v851, %v871
    %v888 = vmul.f32 %v852, %v871
    %v889 = vmul.f32 %v853, %v871
    %v890 = vmul.f32 %v854, %v875
    %v891 = vmul.f32 %v855, %v875
    %v892 = vmul.f32 %v856, %v875
    %v893 = vmul.f32 %v857, %v875
    %v894 = vmul.f32 %v858, %v875
    %v895 = vmul.f32 %v859, %v879
    %v896 = vmul.f32 %v860, %v879
    %v897 = vmul.f32 %v861, %v879
    %v898 = vmul.f32 %v862, %v879
    %v899 = vmul.f32 %v863, %v879
    %v900 = vmul.f32 %v864, %v883
    %v901 = vmul.f32 %v865, %v883
    %v902 = vmul.f32 %v866, %v883
    %v903 = vmul.f32 %v867, %v883
    %v904 = vmul.f32 %v868, %v883
    %925 = vrot.lane.b32.xlu0 %v885, 112
    %v926 = vpop.permute.xlu0 %925
    %927 = vrot.lane.b32.xlu0 %v886, 112
    %v928 = vpop.permute.xlu0 %927
    %929 = vrot.lane.b32.xlu0 %v887, 112
    %v930 = vpop.permute.xlu0 %929
    %931 = vrot.lane.b32.xlu0 %v888, 112
    %v932 = vpop.permute.xlu0 %931
    %933 = vrot.lane.b32.xlu0 %v889, 112
    %v934 = vpop.permute.xlu0 %933
    %935 = vrot.lane.b32.xlu0 %v890, 112
    %v936 = vpop.permute.xlu0 %935
    %937 = vrot.lane.b32.xlu0 %v891, 112
    %v938 = vpop.permute.xlu0 %937
    %939 = vrot.lane.b32.xlu0 %v892, 112
    %v940 = vpop.permute.xlu0 %939
    %941 = vrot.lane.b32.xlu0 %v893, 112
    %v942 = vpop.permute.xlu0 %941
    %943 = vrot.lane.b32.xlu0 %v894, 112
    %v944 = vpop.permute.xlu0 %943
    %945 = vrot.lane.b32.xlu0 %v895, 112
    %v946 = vpop.permute.xlu0 %945
    %947 = vrot.lane.b32.xlu0 %v896, 112
    %v948 = vpop.permute.xlu0 %947
    %949 = vrot.lane.b32.xlu0 %v897, 112
    %v950 = vpop.permute.xlu0 %949
    %951 = vrot.lane.b32.xlu0 %v898, 112
    %v952 = vpop.permute.xlu0 %951
    %953 = vrot.lane.b32.xlu0 %v899, 112
    %v954 = vpop.permute.xlu0 %953
    %955 = vrot.lane.b32.xlu0 %v900, 112
    %v956 = vpop.permute.xlu0 %955
    %957 = vrot.lane.b32.xlu0 %v901, 112
    %v958 = vpop.permute.xlu0 %957
    %959 = vrot.lane.b32.xlu0 %v902, 112
    %v960 = vpop.permute.xlu0 %959
    %961 = vrot.lane.b32.xlu0 %v903, 112
    %v962 = vpop.permute.xlu0 %961
    %963 = vrot.lane.b32.xlu0 %v904, 112
    %v964 = vpop.permute.xlu0 %963
    %v965 = vsel %vm447, %v926, %v928
    %v966 = vsel %vm447, %v928, %v930
    %v967 = vsel %vm447, %v930, %v932
    %v968 = vsel %vm447, %v932, %v934
    %v969 = vsel %vm447, %v936, %v938
    %v970 = vsel %vm447, %v938, %v940
    %v971 = vsel %vm447, %v940, %v942
    %v972 = vsel %vm447, %v942, %v944
    %v973 = vsel %vm447, %v946, %v948
    %v974 = vsel %vm447, %v948, %v950
    %v975 = vsel %vm447, %v950, %v952
    %v976 = vsel %vm447, %v952, %v954
    %v977 = vsel %vm447, %v956, %v958
    %v978 = vsel %vm447, %v958, %v960
    %v979 = vsel %vm447, %v960, %v962
    %v980 = vsel %vm447, %v962, %v964
    %v1001 = vadd.f32 %v806, %v965
    %v1002 = vadd.f32 %v807, %v966
    %v1003 = vadd.f32 %v808, %v967
    %v1004 = vadd.f32 %v809, %v968
    %v1005 = vadd.f32 %v810, %v934
    %v1006 = vadd.f32 %v811, %v969
    %v1007 = vadd.f32 %v812, %v970
    %v1008 = vadd.f32 %v813, %v971
    %v1009 = vadd.f32 %v814, %v972
    %v1010 = vadd.f32 %v815, %v944
    %v1011 = vadd.f32 %v816, %v973
    %v1012 = vadd.f32 %v817, %v974
    %v1013 = vadd.f32 %v818, %v975
    %v1014 = vadd.f32 %v819, %v976
    %v1015 = vadd.f32 %v820, %v954
    %v1016 = vadd.f32 %v821, %v977
    %v1017 = vadd.f32 %v822, %v978
    %v1018 = vadd.f32 %v823, %v979
    %v1019 = vadd.f32 %v824, %v980
    %v1020 = vadd.f32 %v825, %v964
    %s1021 = scalar_lea.vmem %s1, 4
    %v1022 = vld [vmem:[%s1021] ss:$8 sm:$0xf]
    %v1024 = vperm.slane %v1022, 0
    %v1025 = vperm.slane %v1022, 1
    %v1026 = vperm.slane %v1022, 2
    %v1027 = vperm.slane %v1022, 3
    %v1032 = vmul.f32 %v306, %v1024
    %v1033 = vmul.f32 %v307, %v1025
    %v1034 = vmul.f32 %v308, %v1026
    %v1035 = vmul.f32 %v309, %v1027
    %v1036 = vmul.f32 %v311, %v1024
    %v1037 = vmul.f32 %v312, %v1025
    %v1038 = vmul.f32 %v313, %v1026
    %v1039 = vmul.f32 %v314, %v1027
    %v1040 = vmul.f32 %v316, %v1024
    %v1041 = vmul.f32 %v317, %v1025
    %v1042 = vmul.f32 %v318, %v1026
    %v1043 = vmul.f32 %v319, %v1027
    %v1044 = vmul.f32 %v321, %v1024
    %v1045 = vmul.f32 %v322, %v1025
    %v1046 = vmul.f32 %v323, %v1026
    %v1047 = vmul.f32 %v324, %v1027
    %1048 = vset.pattern.permute.xlu0 4
    %1049 = vperm.xlu0 %1048, %v368
    %v1050 = vpop.permute.xlu0 %1049
    %1052 = vset.pattern.permute.xlu0 4
    %1053 = vperm.xlu0 %1052, %v369
    %v1054 = vpop.permute.xlu0 %1053
    %1056 = vset.pattern.permute.xlu0 4
    %1057 = vperm.xlu0 %1056, %v370
    %v1058 = vpop.permute.xlu0 %1057
    %1060 = vset.pattern.permute.xlu0 4
    %1061 = vperm.xlu0 %1060, %v371
    %v1062 = vpop.permute.xlu0 %1061
    %v1064 = vmul.f32 %v1032, %v1050
    %v1065 = vmul.f32 %v1033, %v1050
    %v1066 = vmul.f32 %v1034, %v1050
    %v1067 = vmul.f32 %v1035, %v1050
    %v1068 = vmul.f32 %v1036, %v1054
    %v1069 = vmul.f32 %v1037, %v1054
    %v1070 = vmul.f32 %v1038, %v1054
    %v1071 = vmul.f32 %v1039, %v1054
    %v1072 = vmul.f32 %v1040, %v1058
    %v1073 = vmul.f32 %v1041, %v1058
    %v1074 = vmul.f32 %v1042, %v1058
    %v1075 = vmul.f32 %v1043, %v1058
    %v1076 = vmul.f32 %v1044, %v1062
    %v1077 = vmul.f32 %v1045, %v1062
    %v1078 = vmul.f32 %v1046, %v1062
    %v1079 = vmul.f32 %v1047, %v1062
    %1096 = vrot.lane.b32.xlu0 %v1064, 111
    %v1097 = vpop.permute.xlu0 %1096
    %1098 = vrot.lane.b32.xlu0 %v1065, 111
    %v1099 = vpop.permute.xlu0 %1098
    %1100 = vrot.lane.b32.xlu0 %v1066, 111
    %v1101 = vpop.permute.xlu0 %1100
    %1102 = vrot.lane.b32.xlu0 %v1067, 111
    %v1103 = vpop.permute.xlu0 %1102
    %1104 = vrot.lane.b32.xlu0 %v1068, 111
    %v1105 = vpop.permute.xlu0 %1104
    %1106 = vrot.lane.b32.xlu0 %v1069, 111
    %v1107 = vpop.permute.xlu0 %1106
    %1108 = vrot.lane.b32.xlu0 %v1070, 111
    %v1109 = vpop.permute.xlu0 %1108
    %1110 = vrot.lane.b32.xlu0 %v1071, 111
    %v1111 = vpop.permute.xlu0 %1110
    %1112 = vrot.lane.b32.xlu0 %v1072, 111
    %v1113 = vpop.permute.xlu0 %1112
    %1114 = vrot.lane.b32.xlu0 %v1073, 111
    %v1115 = vpop.permute.xlu0 %1114
    %1116 = vrot.lane.b32.xlu0 %v1074, 111
    %v1117 = vpop.permute.xlu0 %1116
    %1118 = vrot.lane.b32.xlu0 %v1075, 111
    %v1119 = vpop.permute.xlu0 %1118
    %1120 = vrot.lane.b32.xlu0 %v1076, 111
    %v1121 = vpop.permute.xlu0 %1120
    %1122 = vrot.lane.b32.xlu0 %v1077, 111
    %v1123 = vpop.permute.xlu0 %1122
    %1124 = vrot.lane.b32.xlu0 %v1078, 111
    %v1125 = vpop.permute.xlu0 %1124
    %1126 = vrot.lane.b32.xlu0 %v1079, 111
    %v1127 = vpop.permute.xlu0 %1126
    %v1128 = vsel %vm339, %v1097, %v1099
    %v1129 = vsel %vm339, %v1099, %v1101
    %v1130 = vsel %vm339, %v1101, %v1103
    %v1131 = vsel %vm339, %v1105, %v1107
    %v1132 = vsel %vm339, %v1107, %v1109
    %v1133 = vsel %vm339, %v1109, %v1111
    %v1134 = vsel %vm339, %v1113, %v1115
    %v1135 = vsel %vm339, %v1115, %v1117
    %v1136 = vsel %vm339, %v1117, %v1119
    %v1137 = vsel %vm339, %v1121, %v1123
    %v1138 = vsel %vm339, %v1123, %v1125
    %v1139 = vsel %vm339, %v1125, %v1127
    %v1160 = vadd.f32 %v1001, %v1097
    %v1161 = vadd.f32 %v1002, %v1128
    %v1162 = vadd.f32 %v1003, %v1129
    %v1163 = vadd.f32 %v1004, %v1130
    %v1164 = vadd.f32 %v1005, %v1103
    %v1165 = vadd.f32 %v1006, %v1105
    %v1166 = vadd.f32 %v1007, %v1131
    %v1167 = vadd.f32 %v1008, %v1132
    %v1168 = vadd.f32 %v1009, %v1133
    %v1169 = vadd.f32 %v1010, %v1111
    %v1170 = vadd.f32 %v1011, %v1113
    %v1171 = vadd.f32 %v1012, %v1134
    %v1172 = vadd.f32 %v1013, %v1135
    %v1173 = vadd.f32 %v1014, %v1136
    %v1174 = vadd.f32 %v1015, %v1119
    %v1175 = vadd.f32 %v1016, %v1121
    %v1176 = vadd.f32 %v1017, %v1137
    %v1177 = vadd.f32 %v1018, %v1138
    %v1178 = vadd.f32 %v1019, %v1139
    %v1179 = vadd.f32 %v1020, %v1127
    %v1180 = vld [vmem:[#allocation2 + $0x8] sm:$0xff]
    %v1181 = vld [vmem:[#allocation2 + $0x10] sm:$0xff]
    %v1182 = vld [vmem:[#allocation2 + $0x18] sm:$0xff]
    %v1183 = vld [vmem:[#allocation2 + $0x20] sm:$0xff]
    %v1184 = vld [vmem:[#allocation2 + $0x28] sm:$0xff]
    %v1185 = vld [vmem:[#allocation2 + $0x38] sm:$0xff]
    %v1186 = vld [vmem:[#allocation2 + $0x40] sm:$0xff]
    %v1187 = vld [vmem:[#allocation2 + $0x48] sm:$0xff]
    %v1188 = vld [vmem:[#allocation2 + $0x50] sm:$0xff]
    %v1189 = vld [vmem:[#allocation2 + $0x58] sm:$0xff]
    %v1190 = vld [vmem:[#allocation2 + $0x68] sm:$0xff]
    %v1191 = vld [vmem:[#allocation2 + $0x70] sm:$0xff]
    %v1192 = vld [vmem:[#allocation2 + $0x78] sm:$0xff]
    %v1193 = vld [vmem:[#allocation2 + $0x80] sm:$0xff]
    %v1194 = vld [vmem:[#allocation2 + $0x88] sm:$0xff]
    %v1195 = vld [vmem:[#allocation2 + $0x98] sm:$0xff]
    %v1196 = vld [vmem:[#allocation2 + $0xa0] sm:$0xff]
    %v1197 = vld [vmem:[#allocation2 + $0xa8] sm:$0xff]
    %v1198 = vld [vmem:[#allocation2 + $0xb0] sm:$0xff]
    %v1199 = vld [vmem:[#allocation2 + $0xb8] sm:$0xff]
    %s1200 = scalar_lea.vmem %s1, 5
    %v1201 = vld [vmem:[%s1200] ss:$8 sm:$0xf]
    %v1203 = vperm.slane %v1201, 0
    %v1204 = vperm.slane %v1201, 1
    %v1205 = vperm.slane %v1201, 2
    %v1206 = vperm.slane %v1201, 3
    %1207 = vrot.lane.b32.xlu0 %v1203, 1
    %v1208 = vpop.permute.xlu0 %1207
    %1209 = vrot.lane.b32.xlu0 %v1204, 1
    %v1210 = vpop.permute.xlu0 %1209
    %1211 = vrot.lane.b32.xlu0 %v1205, 1
    %v1212 = vpop.permute.xlu0 %1211
    %1213 = vrot.lane.b32.xlu0 %v1206, 1
    %v1214 = vpop.permute.xlu0 %1213
    %vm1215 = vcmask 7168
    %v1216 = vsel %vm1215, %v1208, %v1210
    %v1217 = vsel %vm1215, %v1210, %v1212
    %v1218 = vsel %vm1215, %v1212, %v1214
    %v1224 = vmul.f32 %v1180, %v1208
    %v1225 = vmul.f32 %v1181, %v1216
    %v1226 = vmul.f32 %v1182, %v1217
    %v1227 = vmul.f32 %v1183, %v1218
    %v1228 = vmul.f32 %v1184, %v1214
    %v1229 = vmul.f32 %v1185, %v1208
    %v1230 = vmul.f32 %v1186, %v1216
    %v1231 = vmul.f32 %v1187, %v1217
    %v1232 = vmul.f32 %v1188, %v1218
    %v1233 = vmul.f32 %v1189, %v1214
    %v1234 = vmul.f32 %v1190, %v1208
    %v1235 = vmul.f32 %v1191, %v1216
    %v1236 = vmul.f32 %v1192, %v1217
    %v1237 = vmul.f32 %v1193, %v1218
    %v1238 = vmul.f32 %v1194, %v1214
    %v1239 = vmul.f32 %v1195, %v1208
    %v1240 = vmul.f32 %v1196, %v1216
    %v1241 = vmul.f32 %v1197, %v1217
    %v1242 = vmul.f32 %v1198, %v1218
    %v1243 = vmul.f32 %v1199, %v1214
    %1244 = vset.pattern.permute.xlu0 5
    %1245 = vperm.xlu0 %1244, %v368
    %v1246 = vpop.permute.xlu0 %1245
    %1248 = vset.pattern.permute.xlu0 5
    %1249 = vperm.xlu0 %1248, %v369
    %v1250 = vpop.permute.xlu0 %1249
    %1252 = vset.pattern.permute.xlu0 5
    %1253 = vperm.xlu0 %1252, %v370
    %v1254 = vpop.permute.xlu0 %1253
    %1256 = vset.pattern.permute.xlu0 5
    %1257 = vperm.xlu0 %1256, %v371
    %v1258 = vpop.permute.xlu0 %1257
    %v1260 = vmul.f32 %v1224, %v1246
    %v1261 = vmul.f32 %v1225, %v1246
    %v1262 = vmul.f32 %v1226, %v1246
    %v1263 = vmul.f32 %v1227, %v1246
    %v1264 = vmul.f32 %v1228, %v1246
    %v1265 = vmul.f32 %v1229, %v1250
    %v1266 = vmul.f32 %v1230, %v1250
    %v1267 = vmul.f32 %v1231, %v1250
    %v1268 = vmul.f32 %v1232, %v1250
    %v1269 = vmul.f32 %v1233, %v1250
    %v1270 = vmul.f32 %v1234, %v1254
    %v1271 = vmul.f32 %v1235, %v1254
    %v1272 = vmul.f32 %v1236, %v1254
    %v1273 = vmul.f32 %v1237, %v1254
    %v1274 = vmul.f32 %v1238, %v1254
    %v1275 = vmul.f32 %v1239, %v1258
    %v1276 = vmul.f32 %v1240, %v1258
    %v1277 = vmul.f32 %v1241, %v1258
    %v1278 = vmul.f32 %v1242, %v1258
    %v1279 = vmul.f32 %v1243, %v1258
    %1300 = vrot.lane.b32.xlu0 %v1260, 110
    %v1301 = vpop.permute.xlu0 %1300
    %1302 = vrot.lane.b32.xlu0 %v1261, 110
    %v1303 = vpop.permute.xlu0 %1302
    %1304 = vrot.lane.b32.xlu0 %v1262, 110
    %v1305 = vpop.permute.xlu0 %1304
    %1306 = vrot.lane.b32.xlu0 %v1263, 110
    %v1307 = vpop.permute.xlu0 %1306
    %1308 = vrot.lane.b32.xlu0 %v1264, 110
    %v1309 = vpop.permute.xlu0 %1308
    %1310 = vrot.lane.b32.xlu0 %v1265, 110
    %v1311 = vpop.permute.xlu0 %1310
    %1312 = vrot.lane.b32.xlu0 %v1266, 110
    %v1313 = vpop.permute.xlu0 %1312
    %1314 = vrot.lane.b32.xlu0 %v1267, 110
    %v1315 = vpop.permute.xlu0 %1314
    %1316 = vrot.lane.b32.xlu0 %v1268, 110
    %v1317 = vpop.permute.xlu0 %1316
    %1318 = vrot.lane.b32.xlu0 %v1269, 110
    %v1319 = vpop.permute.xlu0 %1318
    %1320 = vrot.lane.b32.xlu0 %v1270, 110
    %v1321 = vpop.permute.xlu0 %1320
    %1322 = vrot.lane.b32.xlu0 %v1271, 110
    %v1323 = vpop.permute.xlu0 %1322
    %1324 = vrot.lane.b32.xlu0 %v1272, 110
    %v1325 = vpop.permute.xlu0 %1324
    %1326 = vrot.lane.b32.xlu0 %v1273, 110
    %v1327 = vpop.permute.xlu0 %1326
    %1328 = vrot.lane.b32.xlu0 %v1274, 110
    %v1329 = vpop.permute.xlu0 %1328
    %1330 = vrot.lane.b32.xlu0 %v1275, 110
    %v1331 = vpop.permute.xlu0 %1330
    %1332 = vrot.lane.b32.xlu0 %v1276, 110
    %v1333 = vpop.permute.xlu0 %1332
    %1334 = vrot.lane.b32.xlu0 %v1277, 110
    %v1335 = vpop.permute.xlu0 %1334
    %1336 = vrot.lane.b32.xlu0 %v1278, 110
    %v1337 = vpop.permute.xlu0 %1336
    %1338 = vrot.lane.b32.xlu0 %v1279, 110
    %v1339 = vpop.permute.xlu0 %1338
    %vm1340 = vcmask 900096
    %v1341 = vsel %vm1340, %v1301, %v1303
    %v1342 = vsel %vm1340, %v1303, %v1305
    %v1343 = vsel %vm1340, %v1305, %v1307
    %v1344 = vsel %vm1340, %v1307, %v1309
    %v1345 = vsel %vm1340, %v1311, %v1313
    %v1346 = vsel %vm1340, %v1313, %v1315
    %v1347 = vsel %vm1340, %v1315, %v1317
    %v1348 = vsel %vm1340, %v1317, %v1319
    %v1349 = vsel %vm1340, %v1321, %v1323
    %v1350 = vsel %vm1340, %v1323, %v1325
    %v1351 = vsel %vm1340, %v1325, %v1327
    %v1352 = vsel %vm1340, %v1327, %v1329
    %v1353 = vsel %vm1340, %v1331, %v1333
    %v1354 = vsel %vm1340, %v1333, %v1335
    %v1355 = vsel %vm1340, %v1335, %v1337
    %v1356 = vsel %vm1340, %v1337, %v1339
    %v1377 = vadd.f32 %v1160, %v1301
    %v1378 = vadd.f32 %v1161, %v1341
    %v1379 = vadd.f32 %v1162, %v1342
    %v1380 = vadd.f32 %v1163, %v1343
    %v1381 = vadd.f32 %v1164, %v1344
    %v1382 = vadd.f32 %v1165, %v1311
    %v1383 = vadd.f32 %v1166, %v1345
    %v1384 = vadd.f32 %v1167, %v1346
    %v1385 = vadd.f32 %v1168, %v1347
    %v1386 = vadd.f32 %v1169, %v1348
    %v1387 = vadd.f32 %v1170, %v1321
    %v1388 = vadd.f32 %v1171, %v1349
    %v1389 = vadd.f32 %v1172, %v1350
    %v1390 = vadd.f32 %v1173, %v1351
    %v1391 = vadd.f32 %v1174, %v1352
    %v1392 = vadd.f32 %v1175, %v1331
    %v1393 = vadd.f32 %v1176, %v1353
    %v1394 = vadd.f32 %v1177, %v1354
    %v1395 = vadd.f32 %v1178, %v1355
    %v1396 = vadd.f32 %v1179, %v1356
    %s1397 = scalar_lea.vmem %s1, 6
    %v1398 = vld [vmem:[%s1397] ss:$8 sm:$0xf]
    %v1400 = vperm.slane %v1398, 0
    %v1401 = vperm.slane %v1398, 1
    %v1402 = vperm.slane %v1398, 2
    %v1403 = vperm.slane %v1398, 3
    %1404 = vrot.lane.b32.xlu0 %v1400, 15
    %v1405 = vpop.permute.xlu0 %1404
    %1406 = vrot.lane.b32.xlu0 %v1401, 15
    %v1407 = vpop.permute.xlu0 %1406
    %1408 = vrot.lane.b32.xlu0 %v1402, 15
    %v1409 = vpop.permute.xlu0 %1408
    %1410 = vrot.lane.b32.xlu0 %v1403, 15
    %v1411 = vpop.permute.xlu0 %1410
    %vm1412 = vcmask 121856
    %v1413 = vsel %vm1412, %v1405, %v1407
    %v1414 = vsel %vm1412, %v1407, %v1409
    %v1415 = vsel %vm1412, %v1409, %v1411
    %v1421 = vmul.f32 %v1180, %v1405
    %v1422 = vmul.f32 %v1181, %v1413
    %v1423 = vmul.f32 %v1182, %v1414
    %v1424 = vmul.f32 %v1183, %v1415
    %v1425 = vmul.f32 %v1184, %v1411
    %v1426 = vmul.f32 %v1185, %v1405
    %v1427 = vmul.f32 %v1186, %v1413
    %v1428 = vmul.f32 %v1187, %v1414
    %v1429 = vmul.f32 %v1188, %v1415
    %v1430 = vmul.f32 %v1189, %v1411
    %v1431 = vmul.f32 %v1190, %v1405
    %v1432 = vmul.f32 %v1191, %v1413
    %v1433 = vmul.f32 %v1192, %v1414
    %v1434 = vmul.f32 %v1193, %v1415
    %v1435 = vmul.f32 %v1194, %v1411
    %v1436 = vmul.f32 %v1195, %v1405
    %v1437 = vmul.f32 %v1196, %v1413
    %v1438 = vmul.f32 %v1197, %v1414
    %v1439 = vmul.f32 %v1198, %v1415
    %v1440 = vmul.f32 %v1199, %v1411
    %1441 = vset.pattern.permute.xlu0 6
    %1442 = vperm.xlu0 %1441, %v368
    %v1443 = vpop.permute.xlu0 %1442
    %1445 = vset.pattern.permute.xlu0 6
    %1446 = vperm.xlu0 %1445, %v369
    %v1447 = vpop.permute.xlu0 %1446
    %1449 = vset.pattern.permute.xlu0 6
    %1450 = vperm.xlu0 %1449, %v370
    %v1451 = vpop.permute.xlu0 %1450
    %1453 = vset.pattern.permute.xlu0 6
    %1454 = vperm.xlu0 %1453, %v371
    %v1455 = vpop.permute.xlu0 %1454
    %v1457 = vmul.f32 %v1421, %v1443
    %v1458 = vmul.f32 %v1422, %v1443
    %v1459 = vmul.f32 %v1423, %v1443
    %v1460 = vmul.f32 %v1424, %v1443
    %v1461 = vmul.f32 %v1425, %v1443
    %v1462 = vmul.f32 %v1426, %v1447
    %v1463 = vmul.f32 %v1427, %v1447
    %v1464 = vmul.f32 %v1428, %v1447
    %v1465 = vmul.f32 %v1429, %v1447
    %v1466 = vmul.f32 %v1430, %v1447
    %v1467 = vmul.f32 %v1431, %v1451
    %v1468 = vmul.f32 %v1432, %v1451
    %v1469 = vmul.f32 %v1433, %v1451
    %v1470 = vmul.f32 %v1434, %v1451
    %v1471 = vmul.f32 %v1435, %v1451
    %v1472 = vmul.f32 %v1436, %v1455
    %v1473 = vmul.f32 %v1437, %v1455
    %v1474 = vmul.f32 %v1438, %v1455
    %v1475 = vmul.f32 %v1439, %v1455
    %v1476 = vmul.f32 %v1440, %v1455
    %1497 = vrot.lane.b32.xlu0 %v1457, 96
    %v1498 = vpop.permute.xlu0 %1497
    %1499 = vrot.lane.b32.xlu0 %v1458, 96
    %v1500 = vpop.permute.xlu0 %1499
    %1501 = vrot.lane.b32.xlu0 %v1459, 96
    %v1502 = vpop.permute.xlu0 %1501
    %1503 = vrot.lane.b32.xlu0 %v1460, 96
    %v1504 = vpop.permute.xlu0 %1503
    %1505 = vrot.lane.b32.xlu0 %v1461, 96
    %v1506 = vpop.permute.xlu0 %1505
    %1507 = vrot.lane.b32.xlu0 %v1462, 96
    %v1508 = vpop.permute.xlu0 %1507
    %1509 = vrot.lane.b32.xlu0 %v1463, 96
    %v1510 = vpop.permute.xlu0 %1509
    %1511 = vrot.lane.b32.xlu0 %v1464, 96
    %v1512 = vpop.permute.xlu0 %1511
    %1513 = vrot.lane.b32.xlu0 %v1465, 96
    %v1514 = vpop.permute.xlu0 %1513
    %1515 = vrot.lane.b32.xlu0 %v1466, 96
    %v1516 = vpop.permute.xlu0 %1515
    %1517 = vrot.lane.b32.xlu0 %v1467, 96
    %v1518 = vpop.permute.xlu0 %1517
    %1519 = vrot.lane.b32.xlu0 %v1468, 96
    %v1520 = vpop.permute.xlu0 %1519
    %1521 = vrot.lane.b32.xlu0 %v1469, 96
    %v1522 = vpop.permute.xlu0 %1521
    %1523 = vrot.lane.b32.xlu0 %v1470, 96
    %v1524 = vpop.permute.xlu0 %1523
    %1525 = vrot.lane.b32.xlu0 %v1471, 96
    %v1526 = vpop.permute.xlu0 %1525
    %1527 = vrot.lane.b32.xlu0 %v1472, 96
    %v1528 = vpop.permute.xlu0 %1527
    %1529 = vrot.lane.b32.xlu0 %v1473, 96
    %v1530 = vpop.permute.xlu0 %1529
    %1531 = vrot.lane.b32.xlu0 %v1474, 96
    %v1532 = vpop.permute.xlu0 %1531
    %1533 = vrot.lane.b32.xlu0 %v1475, 96
    %v1534 = vpop.permute.xlu0 %1533
    %1535 = vrot.lane.b32.xlu0 %v1476, 96
    %v1536 = vpop.permute.xlu0 %1535
    %vm1537 = vcmask 785408
    %v1538 = vsel %vm1537, %v1498, %v1500
    %v1539 = vsel %vm1537, %v1500, %v1502
    %v1540 = vsel %vm1537, %v1502, %v1504
    %v1541 = vsel %vm1537, %v1504, %v1506
    %v1542 = vsel %vm1537, %v1508, %v1510
    %v1543 = vsel %vm1537, %v1510, %v1512
    %v1544 = vsel %vm1537, %v1512, %v1514
    %v1545 = vsel %vm1537, %v1514, %v1516
    %v1546 = vsel %vm1537, %v1518, %v1520
    %v1547 = vsel %vm1537, %v1520, %v1522
    %v1548 = vsel %vm1537, %v1522, %v1524
    %v1549 = vsel %vm1537, %v1524, %v1526
    %v1550 = vsel %vm1537, %v1528, %v1530
    %v1551 = vsel %vm1537, %v1530, %v1532
    %v1552 = vsel %vm1537, %v1532, %v1534
    %v1553 = vsel %vm1537, %v1534, %v1536
    %v1574 = vadd.f32 %v1377, %v1498
    %v1575 = vadd.f32 %v1378, %v1538
    %v1576 = vadd.f32 %v1379, %v1539
    %v1577 = vadd.f32 %v1380, %v1540
    %v1578 = vadd.f32 %v1381, %v1541
    %v1579 = vadd.f32 %v1382, %v1508
    %v1580 = vadd.f32 %v1383, %v1542
    %v1581 = vadd.f32 %v1384, %v1543
    %v1582 = vadd.f32 %v1385, %v1544
    %v1583 = vadd.f32 %v1386, %v1545
    %v1584 = vadd.f32 %v1387, %v1518
    %v1585 = vadd.f32 %v1388, %v1546
    %v1586 = vadd.f32 %v1389, %v1547
    %v1587 = vadd.f32 %v1390, %v1548
    %v1588 = vadd.f32 %v1391, %v1549
    %v1589 = vadd.f32 %v1392, %v1528
    %v1590 = vadd.f32 %v1393, %v1550
    %v1591 = vadd.f32 %v1394, %v1551
    %v1592 = vadd.f32 %v1395, %v1552
    %v1593 = vadd.f32 %v1396, %v1553
    %s1594 = scalar_lea.vmem %s1, 7
    %v1595 = vld [vmem:[%s1594] ss:$8 sm:$0xf]
    %v1597 = vperm.slane %v1595, 0
    %v1598 = vperm.slane %v1595, 1
    %v1599 = vperm.slane %v1595, 2
    %v1600 = vperm.slane %v1595, 3
    %1601 = vrot.lane.b32.xlu0 %v1597, 16
    %v1602 = vpop.permute.xlu0 %1601
    %1603 = vrot.lane.b32.xlu0 %v1598, 16
    %v1604 = vpop.permute.xlu0 %1603
    %1605 = vrot.lane.b32.xlu0 %v1599, 16
    %v1606 = vpop.permute.xlu0 %1605
    %1607 = vrot.lane.b32.xlu0 %v1600, 16
    %v1608 = vpop.permute.xlu0 %1607
    %vm1609 = vcmask 130048
    %v1610 = vsel %vm1609, %v1602, %v1604
    %v1611 = vsel %vm1609, %v1604, %v1606
    %v1612 = vsel %vm1609, %v1606, %v1608
    %v1618 = vmul.f32 %v1180, %v1602
    %v1619 = vmul.f32 %v1181, %v1610
    %v1620 = vmul.f32 %v1182, %v1611
    %v1621 = vmul.f32 %v1183, %v1612
    %v1622 = vmul.f32 %v1184, %v1608
    %v1623 = vmul.f32 %v1185, %v1602
    %v1624 = vmul.f32 %v1186, %v1610
    %v1625 = vmul.f32 %v1187, %v1611
    %v1626 = vmul.f32 %v1188, %v1612
    %v1627 = vmul.f32 %v1189, %v1608
    %v1628 = vmul.f32 %v1190, %v1602
    %v1629 = vmul.f32 %v1191, %v1610
    %v1630 = vmul.f32 %v1192, %v1611
    %v1631 = vmul.f32 %v1193, %v1612
    %v1632 = vmul.f32 %v1194, %v1608
    %v1633 = vmul.f32 %v1195, %v1602
    %v1634 = vmul.f32 %v1196, %v1610
    %v1635 = vmul.f32 %v1197, %v1611
    %v1636 = vmul.f32 %v1198, %v1612
    %v1637 = vmul.f32 %v1199, %v1608
    %1638 = vset.pattern.permute.xlu0 7
    %1639 = vperm.xlu0 %1638, %v368
    %v1640 = vpop.permute.xlu0 %1639
    %1642 = vset.pattern.permute.xlu0 7
    %1643 = vperm.xlu0 %1642, %v369
    %v1644 = vpop.permute.xlu0 %1643
    %1646 = vset.pattern.permute.xlu0 7
    %1647 = vperm.xlu0 %1646, %v370
    %v1648 = vpop.permute.xlu0 %1647
    %1650 = vset.pattern.permute.xlu0 7
    %1651 = vperm.xlu0 %1650, %v371
    %v1652 = vpop.permute.xlu0 %1651
    %v1654 = vmul.f32 %v1618, %v1640
    %v1655 = vmul.f32 %v1619, %v1640
    %v1656 = vmul.f32 %v1620, %v1640
    %v1657 = vmul.f32 %v1621, %v1640
    %v1658 = vmul.f32 %v1622, %v1640
    %v1659 = vmul.f32 %v1623, %v1644
    %v1660 = vmul.f32 %v1624, %v1644
    %v1661 = vmul.f32 %v1625, %v1644
    %v1662 = vmul.f32 %v1626, %v1644
    %v1663 = vmul.f32 %v1627, %v1644
    %v1664 = vmul.f32 %v1628, %v1648
    %v1665 = vmul.f32 %v1629, %v1648
    %v1666 = vmul.f32 %v1630, %v1648
    %v1667 = vmul.f32 %v1631, %v1648
    %v1668 = vmul.f32 %v1632, %v1648
    %v1669 = vmul.f32 %v1633, %v1652
    %v1670 = vmul.f32 %v1634, %v1652
    %v1671 = vmul.f32 %v1635, %v1652
    %v1672 = vmul.f32 %v1636, %v1652
    %v1673 = vmul.f32 %v1637, %v1652
    %1694 = vrot.lane.b32.xlu0 %v1654, 95
    %v1695 = vpop.permute.xlu0 %1694
    %1696 = vrot.lane.b32.xlu0 %v1655, 95
    %v1697 = vpop.permute.xlu0 %1696
    %1698 = vrot.lane.b32.xlu0 %v1656, 95
    %v1699 = vpop.permute.xlu0 %1698
    %1700 = vrot.lane.b32.xlu0 %v1657, 95
    %v1701 = vpop.permute.xlu0 %1700
    %1702 = vrot.lane.b32.xlu0 %v1658, 95
    %v1703 = vpop.permute.xlu0 %1702
    %1704 = vrot.lane.b32.xlu0 %v1659, 95
    %v1705 = vpop.permute.xlu0 %1704
    %1706 = vrot.lane.b32.xlu0 %v1660, 95
    %v1707 = vpop.permute.xlu0 %1706
    %1708 = vrot.lane.b32.xlu0 %v1661, 95
    %v1709 = vpop.permute.xlu0 %1708
    %1710 = vrot.lane.b32.xlu0 %v1662, 95
    %v1711 = vpop.permute.xlu0 %1710
    %1712 = vrot.lane.b32.xlu0 %v1663, 95
    %v1713 = vpop.permute.xlu0 %1712
    %1714 = vrot.lane.b32.xlu0 %v1664, 95
    %v1715 = vpop.permute.xlu0 %1714
    %1716 = vrot.lane.b32.xlu0 %v1665, 95
    %v1717 = vpop.permute.xlu0 %1716
    %1718 = vrot.lane.b32.xlu0 %v1666, 95
    %v1719 = vpop.permute.xlu0 %1718
    %1720 = vrot.lane.b32.xlu0 %v1667, 95
    %v1721 = vpop.permute.xlu0 %1720
    %1722 = vrot.lane.b32.xlu0 %v1668, 95
    %v1723 = vpop.permute.xlu0 %1722
    %1724 = vrot.lane.b32.xlu0 %v1669, 95
    %v1725 = vpop.permute.xlu0 %1724
    %1726 = vrot.lane.b32.xlu0 %v1670, 95
    %v1727 = vpop.permute.xlu0 %1726
    %1728 = vrot.lane.b32.xlu0 %v1671, 95
    %v1729 = vpop.permute.xlu0 %1728
    %1730 = vrot.lane.b32.xlu0 %v1672, 95
    %v1731 = vpop.permute.xlu0 %1730
    %1732 = vrot.lane.b32.xlu0 %v1673, 95
    %v1733 = vpop.permute.xlu0 %1732
    %vm1734 = vcmask 777216
    %v1735 = vsel %vm1734, %v1695, %v1697
    %v1736 = vsel %vm1734, %v1697, %v1699
    %v1737 = vsel %vm1734, %v1699, %v1701
    %v1738 = vsel %vm1734, %v1701, %v1703
    %v1739 = vsel %vm1734, %v1705, %v1707
    %v1740 = vsel %vm1734, %v1707, %v1709
    %v1741 = vsel %vm1734, %v1709, %v1711
    %v1742 = vsel %vm1734, %v1711, %v1713
    %v1743 = vsel %vm1734, %v1715, %v1717
    %v1744 = vsel %vm1734, %v1717, %v1719
    %v1745 = vsel %vm1734, %v1719, %v1721
    %v1746 = vsel %vm1734, %v1721, %v1723
    %v1747 = vsel %vm1734, %v1725, %v1727
    %v1748 = vsel %vm1734, %v1727, %v1729
    %v1749 = vsel %vm1734, %v1729, %v1731
    %v1750 = vsel %vm1734, %v1731, %v1733
    %v1771 = vadd.f32 %v1574, %v1695
    %v1772 = vadd.f32 %v1575, %v1735
    %v1773 = vadd.f32 %v1576, %v1736
    %v1774 = vadd.f32 %v1577, %v1737
    %v1775 = vadd.f32 %v1578, %v1738
    %v1776 = vadd.f32 %v1579, %v1705
    %v1777 = vadd.f32 %v1580, %v1739
    %v1778 = vadd.f32 %v1581, %v1740
    %v1779 = vadd.f32 %v1582, %v1741
    %v1780 = vadd.f32 %v1583, %v1742
    %v1781 = vadd.f32 %v1584, %v1715
    %v1782 = vadd.f32 %v1585, %v1743
    %v1783 = vadd.f32 %v1586, %v1744
    %v1784 = vadd.f32 %v1587, %v1745
    %v1785 = vadd.f32 %v1588, %v1746
    %v1786 = vadd.f32 %v1589, %v1725
    %v1787 = vadd.f32 %v1590, %v1747
    %v1788 = vadd.f32 %v1591, %v1748
    %v1789 = vadd.f32 %v1592, %v1749
    %v1790 = vadd.f32 %v1593, %v1750
    %s1791 = scalar_lea.vmem %s1, 32
    %v1792 = vld [vmem:[%s1791] ss:$8 sm:$0xf]
    %v1794 = vperm.slane %v1792, 0
    %v1795 = vperm.slane %v1792, 1
    %v1796 = vperm.slane %v1792, 2
    %v1797 = vperm.slane %v1792, 3
    %1798 = vrot.lane.b32.xlu0 %v1794, 17
    %v1799 = vpop.permute.xlu0 %1798
    %1800 = vrot.lane.b32.xlu0 %v1795, 17
    %v1801 = vpop.permute.xlu0 %1800
    %1802 = vrot.lane.b32.xlu0 %v1796, 17
    %v1803 = vpop.permute.xlu0 %1802
    %1804 = vrot.lane.b32.xlu0 %v1797, 17
    %v1805 = vpop.permute.xlu0 %1804
    %vm1806 = vcmask 138240
    %v1807 = vsel %vm1806, %v1799, %v1801
    %v1808 = vsel %vm1806, %v1801, %v1803
    %v1809 = vsel %vm1806, %v1803, %v1805
    %v1815 = vmul.f32 %v1180, %v1799
    %v1816 = vmul.f32 %v1181, %v1807
    %v1817 = vmul.f32 %v1182, %v1808
    %v1818 = vmul.f32 %v1183, %v1809
    %v1819 = vmul.f32 %v1184, %v1805
    %v1820 = vmul.f32 %v1185, %v1799
    %v1821 = vmul.f32 %v1186, %v1807
    %v1822 = vmul.f32 %v1187, %v1808
    %v1823 = vmul.f32 %v1188, %v1809
    %v1824 = vmul.f32 %v1189, %v1805
    %v1825 = vmul.f32 %v1190, %v1799
    %v1826 = vmul.f32 %v1191, %v1807
    %v1827 = vmul.f32 %v1192, %v1808
    %v1828 = vmul.f32 %v1193, %v1809
    %v1829 = vmul.f32 %v1194, %v1805
    %v1830 = vmul.f32 %v1195, %v1799
    %v1831 = vmul.f32 %v1196, %v1807
    %v1832 = vmul.f32 %v1197, %v1808
    %v1833 = vmul.f32 %v1198, %v1809
    %v1834 = vmul.f32 %v1199, %v1805
    %1835 = vset.pattern.permute.xlu0 8
    %1836 = vperm.xlu0 %1835, %v368
    %v1837 = vpop.permute.xlu0 %1836
    %1839 = vset.pattern.permute.xlu0 8
    %1840 = vperm.xlu0 %1839, %v369
    %v1841 = vpop.permute.xlu0 %1840
    %1843 = vset.pattern.permute.xlu0 8
    %1844 = vperm.xlu0 %1843, %v370
    %v1845 = vpop.permute.xlu0 %1844
    %1847 = vset.pattern.permute.xlu0 8
    %1848 = vperm.xlu0 %1847, %v371
    %v1849 = vpop.permute.xlu0 %1848
    %v1851 = vmul.f32 %v1815, %v1837
    %v1852 = vmul.f32 %v1816, %v1837
    %v1853 = vmul.f32 %v1817, %v1837
    %v1854 = vmul.f32 %v1818, %v1837
    %v1855 = vmul.f32 %v1819, %v1837
    %v1856 = vmul.f32 %v1820, %v1841
    %v1857 = vmul.f32 %v1821, %v1841
    %v1858 = vmul.f32 %v1822, %v1841
    %v1859 = vmul.f32 %v1823, %v1841
    %v1860 = vmul.f32 %v1824, %v1841
    %v1861 = vmul.f32 %v1825, %v1845
    %v1862 = vmul.f32 %v1826, %v1845
    %v1863 = vmul.f32 %v1827, %v1845
    %v1864 = vmul.f32 %v1828, %v1845
    %v1865 = vmul.f32 %v1829, %v1845
    %v1866 = vmul.f32 %v1830, %v1849
    %v1867 = vmul.f32 %v1831, %v1849
    %v1868 = vmul.f32 %v1832, %v1849
    %v1869 = vmul.f32 %v1833, %v1849
    %v1870 = vmul.f32 %v1834, %v1849
    %1891 = vrot.lane.b32.xlu0 %v1851, 94
    %v1892 = vpop.permute.xlu0 %1891
    %1893 = vrot.lane.b32.xlu0 %v1852, 94
    %v1894 = vpop.permute.xlu0 %1893
    %1895 = vrot.lane.b32.xlu0 %v1853, 94
    %v1896 = vpop.permute.xlu0 %1895
    %1897 = vrot.lane.b32.xlu0 %v1854, 94
    %v1898 = vpop.permute.xlu0 %1897
    %1899 = vrot.lane.b32.xlu0 %v1855, 94
    %v1900 = vpop.permute.xlu0 %1899
    %1901 = vrot.lane.b32.xlu0 %v1856, 94
    %v1902 = vpop.permute.xlu0 %1901
    %1903 = vrot.lane.b32.xlu0 %v1857, 94
    %v1904 = vpop.permute.xlu0 %1903
    %1905 = vrot.lane.b32.xlu0 %v1858, 94
    %v1906 = vpop.permute.xlu0 %1905
    %1907 = vrot.lane.b32.xlu0 %v1859, 94
    %v1908 = vpop.permute.xlu0 %1907
    %1909 = vrot.lane.b32.xlu0 %v1860, 94
    %v1910 = vpop.permute.xlu0 %1909
    %1911 = vrot.lane.b32.xlu0 %v1861, 94
    %v1912 = vpop.permute.xlu0 %1911
    %1913 = vrot.lane.b32.xlu0 %v1862, 94
    %v1914 = vpop.permute.xlu0 %1913
    %1915 = vrot.lane.b32.xlu0 %v1863, 94
    %v1916 = vpop.permute.xlu0 %1915
    %1917 = vrot.lane.b32.xlu0 %v1864, 94
    %v1918 = vpop.permute.xlu0 %1917
    %1919 = vrot.lane.b32.xlu0 %v1865, 94
    %v1920 = vpop.permute.xlu0 %1919
    %1921 = vrot.lane.b32.xlu0 %v1866, 94
    %v1922 = vpop.permute.xlu0 %1921
    %1923 = vrot.lane.b32.xlu0 %v1867, 94
    %v1924 = vpop.permute.xlu0 %1923
    %1925 = vrot.lane.b32.xlu0 %v1868, 94
    %v1926 = vpop.permute.xlu0 %1925
    %1927 = vrot.lane.b32.xlu0 %v1869, 94
    %v1928 = vpop.permute.xlu0 %1927
    %1929 = vrot.lane.b32.xlu0 %v1870, 94
    %v1930 = vpop.permute.xlu0 %1929
    %vm1931 = vcmask 769024
    %v1932 = vsel %vm1931, %v1892, %v1894
    %v1933 = vsel %vm1931, %v1894, %v1896
    %v1934 = vsel %vm1931, %v1896, %v1898
    %v1935 = vsel %vm1931, %v1898, %v1900
    %v1936 = vsel %vm1931, %v1902, %v1904
    %v1937 = vsel %vm1931, %v1904, %v1906
    %v1938 = vsel %vm1931, %v1906, %v1908
    %v1939 = vsel %vm1931, %v1908, %v1910
    %v1940 = vsel %vm1931, %v1912, %v1914
    %v1941 = vsel %vm1931, %v1914, %v1916
    %v1942 = vsel %vm1931, %v1916, %v1918
    %v1943 = vsel %vm1931, %v1918, %v1920
    %v1944 = vsel %vm1931, %v1922, %v1924
    %v1945 = vsel %vm1931, %v1924, %v1926
    %v1946 = vsel %vm1931, %v1926, %v1928
    %v1947 = vsel %vm1931, %v1928, %v1930
    %v1968 = vadd.f32 %v1771, %v1892
    %v1969 = vadd.f32 %v1772, %v1932
    %v1970 = vadd.f32 %v1773, %v1933
    %v1971 = vadd.f32 %v1774, %v1934
    %v1972 = vadd.f32 %v1775, %v1935
    %v1973 = vadd.f32 %v1776, %v1902
    %v1974 = vadd.f32 %v1777, %v1936
    %v1975 = vadd.f32 %v1778, %v1937
    %v1976 = vadd.f32 %v1779, %v1938
    %v1977 = vadd.f32 %v1780, %v1939
    %v1978 = vadd.f32 %v1781, %v1912
    %v1979 = vadd.f32 %v1782, %v1940
    %v1980 = vadd.f32 %v1783, %v1941
    %v1981 = vadd.f32 %v1784, %v1942
    %v1982 = vadd.f32 %v1785, %v1943
    %v1983 = vadd.f32 %v1786, %v1922
    %v1984 = vadd.f32 %v1787, %v1944
    %v1985 = vadd.f32 %v1788, %v1945
    %v1986 = vadd.f32 %v1789, %v1946
    %v1987 = vadd.f32 %v1790, %v1947
    %v1988 = vld [vmem:[%s5] sm:$0xff]
    %v1989 = vld [vmem:[%s5 + $0x8] sm:$0xff]
    %v1990 = vld [vmem:[%s5 + $0x10] sm:$0xff]
    %v1991 = vld [vmem:[%s5 + $0x18] sm:$0xff]
    %1993 = vset.pattern.permute.xlu0 0
    %1994 = vperm.xlu0 %1993, %v1988
    %v1995 = vpop.permute.xlu0 %1994
    %1998 = vset.pattern.permute.xlu0 0
    %1999 = vperm.xlu0 %1998, %v1989
    %v2000 = vpop.permute.xlu0 %1999
    %2003 = vset.pattern.permute.xlu0 0
    %2004 = vperm.xlu0 %2003, %v1990
    %v2005 = vpop.permute.xlu0 %2004
    %2008 = vset.pattern.permute.xlu0 0
    %2009 = vperm.xlu0 %2008, %v1991
    %v2010 = vpop.permute.xlu0 %2009
    %v2012 = vadd.f32 %v1968, %v1995
    %v2013 = vadd.f32 %v1969, %v1995
    %v2014 = vadd.f32 %v1970, %v1995
    %v2015 = vadd.f32 %v1971, %v1995
    %v2016 = vadd.f32 %v1972, %v1995
    %v2017 = vadd.f32 %v1973, %v2000
    %v2018 = vadd.f32 %v1974, %v2000
    %v2019 = vadd.f32 %v1975, %v2000
    %v2020 = vadd.f32 %v1976, %v2000
    %v2021 = vadd.f32 %v1977, %v2000
    %v2022 = vadd.f32 %v1978, %v2005
    %v2023 = vadd.f32 %v1979, %v2005
    %v2024 = vadd.f32 %v1980, %v2005
    %v2025 = vadd.f32 %v1981, %v2005
    %v2026 = vadd.f32 %v1982, %v2005
    %v2027 = vadd.f32 %v1983, %v2010
    %v2028 = vadd.f32 %v1984, %v2010
    %v2029 = vadd.f32 %v1985, %v2010
    %v2030 = vadd.f32 %v1986, %v2010
    %v2031 = vadd.f32 %v1987, %v2010
    %v2032 = vsub.f32 0.0, %v2012
    %v2033 = vsub.f32 0.0, %v2013
    %v2034 = vsub.f32 0.0, %v2014
    %v2035 = vsub.f32 0.0, %v2015
    %v2036 = vsub.f32 0.0, %v2016
    %v2037 = vsub.f32 0.0, %v2017
    %v2038 = vsub.f32 0.0, %v2018
    %v2039 = vsub.f32 0.0, %v2019
    %v2040 = vsub.f32 0.0, %v2020
    %v2041 = vsub.f32 0.0, %v2021
    %v2042 = vsub.f32 0.0, %v2022
    %v2043 = vsub.f32 0.0, %v2023
    %v2044 = vsub.f32 0.0, %v2024
    %v2045 = vsub.f32 0.0, %v2025
    %v2046 = vsub.f32 0.0, %v2026
    %v2047 = vsub.f32 0.0, %v2027
    %v2048 = vsub.f32 0.0, %v2028
    %v2049 = vsub.f32 0.0, %v2029
    %v2050 = vsub.f32 0.0, %v2030
    %v2051 = vsub.f32 0.0, %v2031
    %v2052 = vmul.f32 %v2032, 1.442695
    %v2053 = vpow.pop %v2052
    %v2054 = vmul.f32 %v2033, 1.442695
    %v2055 = vpow.pop %v2054
    %v2056 = vmul.f32 %v2034, 1.442695
    %v2057 = vpow.pop %v2056
    %v2058 = vmul.f32 %v2035, 1.442695
    %v2059 = vpow.pop %v2058
    %v2060 = vmul.f32 %v2036, 1.442695
    %v2061 = vpow.pop %v2060
    %v2062 = vmul.f32 %v2037, 1.442695
    %v2063 = vpow.pop %v2062
    %v2064 = vmul.f32 %v2038, 1.442695
    %v2065 = vpow.pop %v2064
    %v2066 = vmul.f32 %v2039, 1.442695
    %v2067 = vpow.pop %v2066
    %v2068 = vmul.f32 %v2040, 1.442695
    %v2069 = vpow.pop %v2068
    %v2070 = vmul.f32 %v2041, 1.442695
    %v2071 = vpow.pop %v2070
    %v2072 = vmul.f32 %v2042, 1.442695
    %v2073 = vpow.pop %v2072
    %v2074 = vmul.f32 %v2043, 1.442695
    %v2075 = vpow.pop %v2074
    %v2076 = vmul.f32 %v2044, 1.442695
    %v2077 = vpow.pop %v2076
    %v2078 = vmul.f32 %v2045, 1.442695
    %v2079 = vpow.pop %v2078
    %v2080 = vmul.f32 %v2046, 1.442695
    %v2081 = vpow.pop %v2080
    %v2082 = vmul.f32 %v2047, 1.442695
    %v2083 = vpow.pop %v2082
    %v2084 = vmul.f32 %v2048, 1.442695
    %v2085 = vpow.pop %v2084
    %v2086 = vmul.f32 %v2049, 1.442695
    %v2087 = vpow.pop %v2086
    %v2088 = vmul.f32 %v2050, 1.442695
    %v2089 = vpow.pop %v2088
    %v2090 = vmul.f32 %v2051, 1.442695
    %v2091 = vpow.pop %v2090
    %v2092 = vadd.f32 %v2053, 1.0
    %v2093 = vadd.f32 %v2055, 1.0
    %v2094 = vadd.f32 %v2057, 1.0
    %v2095 = vadd.f32 %v2059, 1.0
    %v2096 = vadd.f32 %v2061, 1.0
    %v2097 = vadd.f32 %v2063, 1.0
    %v2098 = vadd.f32 %v2065, 1.0
    %v2099 = vadd.f32 %v2067, 1.0
    %v2100 = vadd.f32 %v2069, 1.0
    %v2101 = vadd.f32 %v2071, 1.0
    %v2102 = vadd.f32 %v2073, 1.0
    %v2103 = vadd.f32 %v2075, 1.0
    %v2104 = vadd.f32 %v2077, 1.0
    %v2105 = vadd.f32 %v2079, 1.0
    %v2106 = vadd.f32 %v2081, 1.0
    %v2107 = vadd.f32 %v2083, 1.0
    %v2108 = vadd.f32 %v2085, 1.0
    %v2109 = vadd.f32 %v2087, 1.0
    %v2110 = vadd.f32 %v2089, 1.0
    %v2111 = vadd.f32 %v2091, 1.0
    %v2112 = vrcp.pop %v2092
    %v2113 = vrcp.pop %v2093
    %v2114 = vrcp.pop %v2094
    %v2115 = vrcp.pop %v2095
    %v2116 = vrcp.pop %v2096
    %v2117 = vrcp.pop %v2097
    %v2118 = vrcp.pop %v2098
    %v2119 = vrcp.pop %v2099
    %v2120 = vrcp.pop %v2100
    %v2121 = vrcp.pop %v2101
    %v2122 = vrcp.pop %v2102
    %v2123 = vrcp.pop %v2103
    %v2124 = vrcp.pop %v2104
    %v2125 = vrcp.pop %v2105
    %v2126 = vrcp.pop %v2106
    %v2127 = vrcp.pop %v2107
    %v2128 = vrcp.pop %v2108
    %v2129 = vrcp.pop %v2109
    %v2130 = vrcp.pop %v2110
    %v2131 = vrcp.pop %v2111
    %v2132 = vmul.f32 %v2012, %v2112
    %v2133 = vmul.f32 %v2013, %v2113
    %v2134 = vmul.f32 %v2014, %v2114
    %v2135 = vmul.f32 %v2015, %v2115
    %v2136 = vmul.f32 %v2016, %v2116
    %v2137 = vmul.f32 %v2017, %v2117
    %v2138 = vmul.f32 %v2018, %v2118
    %v2139 = vmul.f32 %v2019, %v2119
    %v2140 = vmul.f32 %v2020, %v2120
    %v2141 = vmul.f32 %v2021, %v2121
    %v2142 = vmul.f32 %v2022, %v2122
    %v2143 = vmul.f32 %v2023, %v2123
    %v2144 = vmul.f32 %v2024, %v2124
    %v2145 = vmul.f32 %v2025, %v2125
    %v2146 = vmul.f32 %v2026, %v2126
    %v2147 = vmul.f32 %v2027, %v2127
    %v2148 = vmul.f32 %v2028, %v2128
    %v2149 = vmul.f32 %v2029, %v2129
    %v2150 = vmul.f32 %v2030, %v2130
    %v2151 = vmul.f32 %v2031, %v2131
    %v2152 = vpack.c.bf16 %v2137, %v2132
    %v2153 = vpack.c.bf16 %v2138, %v2133
    %v2154 = vpack.c.bf16 %v2139, %v2134
    %v2155 = vpack.c.bf16 %v2140, %v2135
    %v2156 = vpack.c.bf16 %v2141, %v2136
    %v2157 = vpack.c.bf16 %v2147, %v2142
    %v2158 = vpack.c.bf16 %v2148, %v2143
    %v2159 = vpack.c.bf16 %v2149, %v2144
    %v2160 = vpack.c.bf16 %v2150, %v2145
    %v2161 = vpack.c.bf16 %v2151, %v2146
    %v2162 = vld [vmem:[%s6] sm:$0x1]
    %v2163 = vld [vmem:[%s7] sm:$0x3]
    %2165 = vset.pattern.permute.xlu0 0
    %2166 = vperm.xlu0 %2165, %v2163
    %v2167 = vpop.permute.xlu0 %2166
    %2179 = vrot.lane.b32.xlu0 %v2152, 17
    %v2180 = vpop.permute.xlu0 %2179
    %2181 = vrot.lane.b32.xlu0 %v2153, 17
    %v2182 = vpop.permute.xlu0 %2181
    %2183 = vrot.lane.b32.xlu0 %v2154, 17
    %v2184 = vpop.permute.xlu0 %2183
    %2185 = vrot.lane.b32.xlu0 %v2155, 17
    %v2186 = vpop.permute.xlu0 %2185
    %2187 = vrot.lane.b32.xlu0 %v2156, 17
    %v2188 = vpop.permute.xlu0 %2187
    %2189 = vrot.lane.b32.xlu0 %v2157, 17
    %v2190 = vpop.permute.xlu0 %2189
    %2191 = vrot.lane.b32.xlu0 %v2158, 17
    %v2192 = vpop.permute.xlu0 %2191
    %2193 = vrot.lane.b32.xlu0 %v2159, 17
    %v2194 = vpop.permute.xlu0 %2193
    %2195 = vrot.lane.b32.xlu0 %v2160, 17
    %v2196 = vpop.permute.xlu0 %2195
    %2197 = vrot.lane.b32.xlu0 %v2161, 17
    %v2198 = vpop.permute.xlu0 %2197
    %vm2199 = vcmask 138240
    %v2200 = vsel %vm2199, %v2180, %v2182
    %v2201 = vsel %vm2199, %v2182, %v2184
    %v2202 = vsel %vm2199, %v2184, %v2186
    %v2203 = vsel %vm2199, %v2186, %v2188
    %v2204 = vsel %vm2199, %v2190, %v2192
    %v2205 = vsel %vm2199, %v2192, %v2194
    %v2206 = vsel %vm2199, %v2194, %v2196
    %v2207 = vsel %vm2199, %v2196, %v2198
    %vm2216 = vcmask 261120
    %v2218 = vsel %vm2216, %v2162, 0
    %2220 = vmatpush.bf16.msra.mxu0 0
    %2221 = vmatpush.bf16.msra.mxu0 0
    %2222 = vmatpush.bf16.msra.mxu0 0
    %2223 = vmatpush.bf16.msra.mxu0 0
    %2224 = vmatpush.bf16.msra.mxu0 0
    %2225 = vmatpush.bf16.msra.mxu0 0
    %2226 = vmatpush.bf16.msra.mxu0 %v2204
    %2227 = vmatpush.bf16.msra.mxu0 %v2200
    %2228 = vmatmul.bf16.gmra.mxu0 %v2218
    %v2229 = vpop.f32.mrf.mxu0
    %v2230 = vadd.f32 %v2167, %v2229
    %v2231 = vpop.f32.mrf.mxu0
    %2232 = vdwg.mxu0
    %2233 = vmatpush.bf16.msra.mxu0 0
    %2234 = vmatpush.bf16.msra.mxu0 0
    %2235 = vmatpush.bf16.msra.mxu0 0
    %2236 = vmatpush.bf16.msra.mxu0 0
    %2237 = vmatpush.bf16.msra.mxu0 0
    %2238 = vmatpush.bf16.msra.mxu0 0
    %2239 = vmatpush.bf16.msra.mxu0 %v2205
    %2240 = vmatpush.bf16.msra.mxu0 %v2201
    %2241 = vmatmul.bf16.gmra.mxu0 %v2218
    %v2242 = vpop.f32.mrf.mxu0
    %v2243 = vadd.f32 %v2167, %v2242
    %v2244 = vpop.f32.mrf.mxu0
    %2245 = vdwg.mxu0
    %2246 = vmatpush.bf16.msra.mxu0 0
    %2247 = vmatpush.bf16.msra.mxu0 0
    %2248 = vmatpush.bf16.msra.mxu0 0
    %2249 = vmatpush.bf16.msra.mxu0 0
    %2250 = vmatpush.bf16.msra.mxu0 0
    %2251 = vmatpush.bf16.msra.mxu0 0
    %2252 = vmatpush.bf16.msra.mxu0 %v2206
    %2253 = vmatpush.bf16.msra.mxu0 %v2202
    %2254 = vmatmul.bf16.gmra.mxu0 %v2218
    %v2255 = vpop.f32.mrf.mxu0
    %v2256 = vadd.f32 %v2167, %v2255
    %v2257 = vpop.f32.mrf.mxu0
    %2258 = vdwg.mxu0
    %2259 = vmatpush.bf16.msra.mxu0 0
    %2260 = vmatpush.bf16.msra.mxu0 0
    %2261 = vmatpush.bf16.msra.mxu0 0
    %2262 = vmatpush.bf16.msra.mxu0 0
    %2263 = vmatpush.bf16.msra.mxu0 0
    %2264 = vmatpush.bf16.msra.mxu0 0
    %2265 = vmatpush.bf16.msra.mxu0 %v2207
    %2266 = vmatpush.bf16.msra.mxu0 %v2203
    %2267 = vmatmul.bf16.gmra.mxu0 %v2218
    %v2268 = vpop.f32.mrf.mxu0
    %v2269 = vadd.f32 %v2167, %v2268
    %v2270 = vpop.f32.mrf.mxu0
    %2271 = vdwg.mxu0
    %v2272 = vsub.f32 0.0, %v2230
    %v2273 = vsub.f32 0.0, %v2243
    %v2274 = vsub.f32 0.0, %v2256
    %v2275 = vsub.f32 0.0, %v2269
    %v2276 = vmul.f32 %v2272, 1.442695
    %v2277 = vpow.pop %v2276
    %v2278 = vmul.f32 %v2273, 1.442695
    %v2279 = vpow.pop %v2278
    %v2280 = vmul.f32 %v2274, 1.442695
    %v2281 = vpow.pop %v2280
    %v2282 = vmul.f32 %v2275, 1.442695
    %v2283 = vpow.pop %v2282
    %v2284 = vadd.f32 %v2277, 1.0
    %v2285 = vadd.f32 %v2279, 1.0
    %v2286 = vadd.f32 %v2281, 1.0
    %v2287 = vadd.f32 %v2283, 1.0
    %v2288 = vrcp.pop %v2284
    %v2289 = vrcp.pop %v2285
    %v2290 = vrcp.pop %v2286
    %v2291 = vrcp.pop %v2287
    %v2292 = vmul.f32 %v2230, %v2288
    %v2293 = vmul.f32 %v2243, %v2289
    %v2294 = vmul.f32 %v2256, %v2290
    %v2295 = vmul.f32 %v2269, %v2291
    %v2296 = vld [vmem:[%s8] sm:$0xf]
    %v2297 = vld [vmem:[%s8 + $0x4] sm:$0xf]
    %v2298 = vld [vmem:[%s8 + $0x8] sm:$0xf]
    %v2299 = vld [vmem:[%s8 + $0xc] sm:$0xf]
    %v2300 = vpack.c.bf16 %v2292, %v2292
    %v2301 = vpack.c.bf16 %v2293, %v2293
    %v2302 = vpack.c.bf16 %v2294, %v2294
    %v2303 = vpack.c.bf16 %v2295, %v2295
    %v2304 = vld [vmem:[%s9] sm:$0xff]
    %v2305 = vld [vmem:[%s9 + $0x8] sm:$0xff]
    %v2306 = vld [vmem:[%s9 + $0x10] sm:$0xff]
    %v2307 = vld [vmem:[%s9 + $0x18] sm:$0xff]
    %2309 = vset.pattern.permute.xlu0 0
    %2310 = vperm.xlu0 %2309, %v2304
    %v2311 = vpop.permute.xlu0 %2310
    %2314 = vset.pattern.permute.xlu0 0
    %2315 = vperm.xlu0 %2314, %v2305
    %v2316 = vpop.permute.xlu0 %2315
    %2319 = vset.pattern.permute.xlu0 0
    %2320 = vperm.xlu0 %2319, %v2306
    %v2321 = vpop.permute.xlu0 %2320
    %2324 = vset.pattern.permute.xlu0 0
    %2325 = vperm.xlu0 %2324, %v2307
    %v2326 = vpop.permute.xlu0 %2325
    %v2332 = vunpack.c.l.b16 %v2296
    %v2333 = vunpack.c.l.b16 %v2297
    %v2334 = vunpack.c.l.b16 %v2298
    %v2335 = vunpack.c.l.b16 %v2299
    %v2336 = vpack.c.b16 %v2333, %v2332
    %v2337 = vpack.c.b16 %v2335, %v2334
    %vm2338 = vcmask 15360
    %v2340 = vsel %vm2338, %v2336, 0
    %v2343 = vsel %vm2338, %v2337, 0
    %vm2345 = vcmask 1040384
    %v2347 = vsel %vm2345, %v2300, 0
    %v2350 = vsel %vm2345, %v2301, 0
    %v2353 = vsel %vm2345, %v2302, 0
    %v2356 = vsel %vm2345, %v2303, 0
    %2358 = vmatpush.bf16.msra.mxu0 0
    %2359 = vmatpush.bf16.msra.mxu0 0
    %2360 = vmatpush.bf16.msra.mxu0 0
    %2361 = vmatpush.bf16.msra.mxu0 0
    %2362 = vmatpush.bf16.msra.mxu0 0
    %2363 = vmatpush.bf16.msra.mxu0 0
    %2364 = vmatpush.bf16.msra.mxu0 0
    %2365 = vmatpush.bf16.msra.mxu0 %v2347
    %2366 = vmatmul.bf16.gmra.mxu0 %v2340
    %v2367 = vpop.f32.mrf.mxu0
    %v2368 = vadd.f32 %v2311, %v2367
    %v2369 = vpop.f32.mrf.mxu0
    %v2370 = vadd.f32 %v2316, %v2369
    %2371 = vmatmul.bf16.gmra.mxu0 %v2343
    %v2372 = vpop.f32.mrf.mxu0
    %v2373 = vadd.f32 %v2321, %v2372
    %v2374 = vpop.f32.mrf.mxu0
    %v2375 = vadd.f32 %v2326, %v2374
    %2376 = vdwg.mxu0
    %2377 = vmatpush.bf16.msra.mxu0 0
    %2378 = vmatpush.bf16.msra.mxu0 0
    %2379 = vmatpush.bf16.msra.mxu0 0
    %2380 = vmatpush.bf16.msra.mxu0 0
    %2381 = vmatpush.bf16.msra.mxu0 0
    %2382 = vmatpush.bf16.msra.mxu0 0
    %2383 = vmatpush.bf16.msra.mxu0 0
    %2384 = vmatpush.bf16.msra.mxu0 %v2350
    %2385 = vmatmul.bf16.gmra.mxu0 %v2340
    %v2386 = vpop.f32.mrf.mxu0
    %v2387 = vadd.f32 %v2311, %v2386
    %v2388 = vpop.f32.mrf.mxu0
    %v2389 = vadd.f32 %v2316, %v2388
    %2390 = vmatmul.bf16.gmra.mxu0 %v2343
    %v2391 = vpop.f32.mrf.mxu0
    %v2392 = vadd.f32 %v2321, %v2391
    %v2393 = vpop.f32.mrf.mxu0
    %v2394 = vadd.f32 %v2326, %v2393
    %2395 = vdwg.mxu0
    %2396 = vmatpush.bf16.msra.mxu0 0
    %2397 = vmatpush.bf16.msra.mxu0 0
    %2398 = vmatpush.bf16.msra.mxu0 0
    %2399 = vmatpush.bf16.msra.mxu0 0
    %2400 = vmatpush.bf16.msra.mxu0 0
    %2401 = vmatpush.bf16.msra.mxu0 0
    %2402 = vmatpush.bf16.msra.mxu0 0
    %2403 = vmatpush.bf16.msra.mxu0 %v2353
    %2404 = vmatmul.bf16.gmra.mxu0 %v2340
    %v2405 = vpop.f32.mrf.mxu0
    %v2406 = vadd.f32 %v2311, %v2405
    %v2407 = vpop.f32.mrf.mxu0
    %v2408 = vadd.f32 %v2316, %v2407
    %2409 = vmatmul.bf16.gmra.mxu0 %v2343
    %v2410 = vpop.f32.mrf.mxu0
    %v2411 = vadd.f32 %v2321, %v2410
    %v2412 = vpop.f32.mrf.mxu0
    %v2413 = vadd.f32 %v2326, %v2412
    %2414 = vdwg.mxu0
    %2415 = vmatpush.bf16.msra.mxu0 0
    %2416 = vmatpush.bf16.msra.mxu0 0
    %2417 = vmatpush.bf16.msra.mxu0 0
    %2418 = vmatpush.bf16.msra.mxu0 0
    %2419 = vmatpush.bf16.msra.mxu0 0
    %2420 = vmatpush.bf16.msra.mxu0 0
    %2421 = vmatpush.bf16.msra.mxu0 0
    %2422 = vmatpush.bf16.msra.mxu0 %v2356
    %2423 = vmatmul.bf16.gmra.mxu0 %v2340
    %v2424 = vpop.f32.mrf.mxu0
    %v2425 = vadd.f32 %v2311, %v2424
    %v2426 = vpop.f32.mrf.mxu0
    %v2427 = vadd.f32 %v2316, %v2426
    %2428 = vmatmul.bf16.gmra.mxu0 %v2343
    %v2429 = vpop.f32.mrf.mxu0
    %v2430 = vadd.f32 %v2321, %v2429
    %v2431 = vpop.f32.mrf.mxu0
    %v2432 = vadd.f32 %v2326, %v2431
    %2433 = vdwg.mxu0
    %v2434 = vsub.f32 0.0, %v2368
    %v2435 = vsub.f32 0.0, %v2387
    %v2436 = vsub.f32 0.0, %v2406
    %v2437 = vsub.f32 0.0, %v2425
    %v2438 = vsub.f32 0.0, %v2370
    %v2439 = vsub.f32 0.0, %v2389
    %v2440 = vsub.f32 0.0, %v2408
    %v2441 = vsub.f32 0.0, %v2427
    %v2442 = vsub.f32 0.0, %v2373
    %v2443 = vsub.f32 0.0, %v2392
    %v2444 = vsub.f32 0.0, %v2411
    %v2445 = vsub.f32 0.0, %v2430
    %v2446 = vsub.f32 0.0, %v2375
    %v2447 = vsub.f32 0.0, %v2394
    %v2448 = vsub.f32 0.0, %v2413
    %v2449 = vsub.f32 0.0, %v2432
    %v2450 = vmul.f32 %v2434, 1.442695
    %v2451 = vpow.pop %v2450
    %v2452 = vmul.f32 %v2435, 1.442695
    %v2453 = vpow.pop %v2452
    %v2454 = vmul.f32 %v2436, 1.442695
    %v2455 = vpow.pop %v2454
    %v2456 = vmul.f32 %v2437, 1.442695
    %v2457 = vpow.pop %v2456
    %v2458 = vmul.f32 %v2438, 1.442695
    %v2459 = vpow.pop %v2458
    %v2460 = vmul.f32 %v2439, 1.442695
    %v2461 = vpow.pop %v2460
    %v2462 = vmul.f32 %v2440, 1.442695
    %v2463 = vpow.pop %v2462
    %v2464 = vmul.f32 %v2441, 1.442695
    %v2465 = vpow.pop %v2464
    %v2466 = vmul.f32 %v2442, 1.442695
    %v2467 = vpow.pop %v2466
    %v2468 = vmul.f32 %v2443, 1.442695
    %v2469 = vpow.pop %v2468
    %v2470 = vmul.f32 %v2444, 1.442695
    %v2471 = vpow.pop %v2470
    %v2472 = vmul.f32 %v2445, 1.442695
    %v2473 = vpow.pop %v2472
    %v2474 = vmul.f32 %v2446, 1.442695
    %v2475 = vpow.pop %v2474
    %v2476 = vmul.f32 %v2447, 1.442695
    %v2477 = vpow.pop %v2476
    %v2478 = vmul.f32 %v2448, 1.442695
    %v2479 = vpow.pop %v2478
    %v2480 = vmul.f32 %v2449, 1.442695
    %v2481 = vpow.pop %v2480
    %v2482 = vadd.f32 %v2451, 1.0
    %v2483 = vadd.f32 %v2453, 1.0
    %v2484 = vadd.f32 %v2455, 1.0
    %v2485 = vadd.f32 %v2457, 1.0
    %v2486 = vadd.f32 %v2459, 1.0
    %v2487 = vadd.f32 %v2461, 1.0
    %v2488 = vadd.f32 %v2463, 1.0
    %v2489 = vadd.f32 %v2465, 1.0
    %v2490 = vadd.f32 %v2467, 1.0
    %v2491 = vadd.f32 %v2469, 1.0
    %v2492 = vadd.f32 %v2471, 1.0
    %v2493 = vadd.f32 %v2473, 1.0
    %v2494 = vadd.f32 %v2475, 1.0
    %v2495 = vadd.f32 %v2477, 1.0
    %v2496 = vadd.f32 %v2479, 1.0
    %v2497 = vadd.f32 %v2481, 1.0
    %v2498 = vrcp.pop %v2482
    %v2499 = vrcp.pop %v2483
    %v2500 = vrcp.pop %v2484
    %v2501 = vrcp.pop %v2485
    %v2502 = vrcp.pop %v2486
    %v2503 = vrcp.pop %v2487
    %v2504 = vrcp.pop %v2488
    %v2505 = vrcp.pop %v2489
    %v2506 = vrcp.pop %v2490
    %v2507 = vrcp.pop %v2491
    %v2508 = vrcp.pop %v2492
    %v2509 = vrcp.pop %v2493
    %v2510 = vrcp.pop %v2494
    %v2511 = vrcp.pop %v2495
    %v2512 = vrcp.pop %v2496
    %v2513 = vrcp.pop %v2497
    %2530 = vrot.lane.b32.xlu0 %v2498, 111
    %v2531 = vpop.permute.xlu0 %2530
    %2532 = vrot.lane.b32.xlu0 %v2499, 111
    %v2533 = vpop.permute.xlu0 %2532
    %2534 = vrot.lane.b32.xlu0 %v2500, 111
    %v2535 = vpop.permute.xlu0 %2534
    %2536 = vrot.lane.b32.xlu0 %v2501, 111
    %v2537 = vpop.permute.xlu0 %2536
    %2538 = vrot.lane.b32.xlu0 %v2502, 111
    %v2539 = vpop.permute.xlu0 %2538
    %2540 = vrot.lane.b32.xlu0 %v2503, 111
    %v2541 = vpop.permute.xlu0 %2540
    %2542 = vrot.lane.b32.xlu0 %v2504, 111
    %v2543 = vpop.permute.xlu0 %2542
    %2544 = vrot.lane.b32.xlu0 %v2505, 111
    %v2545 = vpop.permute.xlu0 %2544
    %2546 = vrot.lane.b32.xlu0 %v2506, 111
    %v2547 = vpop.permute.xlu0 %2546
    %2548 = vrot.lane.b32.xlu0 %v2507, 111
    %v2549 = vpop.permute.xlu0 %2548
    %2550 = vrot.lane.b32.xlu0 %v2508, 111
    %v2551 = vpop.permute.xlu0 %2550
    %2552 = vrot.lane.b32.xlu0 %v2509, 111
    %v2553 = vpop.permute.xlu0 %2552
    %2554 = vrot.lane.b32.xlu0 %v2510, 111
    %v2555 = vpop.permute.xlu0 %2554
    %2556 = vrot.lane.b32.xlu0 %v2511, 111
    %v2557 = vpop.permute.xlu0 %2556
    %2558 = vrot.lane.b32.xlu0 %v2512, 111
    %v2559 = vpop.permute.xlu0 %2558
    %2560 = vrot.lane.b32.xlu0 %v2513, 111
    %v2561 = vpop.permute.xlu0 %2560
    %v2562 = vsel %vm339, %v2531, %v2533
    %v2563 = vsel %vm339, %v2533, %v2535
    %v2564 = vsel %vm339, %v2535, %v2537
    %v2565 = vsel %vm339, %v2539, %v2541
    %v2566 = vsel %vm339, %v2541, %v2543
    %v2567 = vsel %vm339, %v2543, %v2545
    %v2568 = vsel %vm339, %v2547, %v2549
    %v2569 = vsel %vm339, %v2549, %v2551
    %v2570 = vsel %vm339, %v2551, %v2553
    %v2571 = vsel %vm339, %v2555, %v2557
    %v2572 = vsel %vm339, %v2557, %v2559
    %v2573 = vsel %vm339, %v2559, %v2561
    %v2594 = vmul.f32 %v2132, %v2531
    %v2595 = vmul.f32 %v2133, %v2562
    %v2596 = vmul.f32 %v2134, %v2563
    %v2597 = vmul.f32 %v2135, %v2564
    %v2598 = vmul.f32 %v2136, %v2537
    %v2599 = vmul.f32 %v2137, %v2539
    %v2600 = vmul.f32 %v2138, %v2565
    %v2601 = vmul.f32 %v2139, %v2566
    %v2602 = vmul.f32 %v2140, %v2567
    %v2603 = vmul.f32 %v2141, %v2545
    %v2604 = vmul.f32 %v2142, %v2547
    %v2605 = vmul.f32 %v2143, %v2568
    %v2606 = vmul.f32 %v2144, %v2569
    %v2607 = vmul.f32 %v2145, %v2570
    %v2608 = vmul.f32 %v2146, %v2553
    %v2609 = vmul.f32 %v2147, %v2555
    %v2610 = vmul.f32 %v2148, %v2571
    %v2611 = vmul.f32 %v2149, %v2572
    %v2612 = vmul.f32 %v2150, %v2573
    %v2613 = vmul.f32 %v2151, %v2561
    %v2614 = vld [vmem:[%s10] sm:$0xf]
    %v2615 = vpack.c.bf16 %v2599, %v2594
    %v2616 = vpack.c.bf16 %v2600, %v2595
    %v2617 = vpack.c.bf16 %v2601, %v2596
    %v2618 = vpack.c.bf16 %v2602, %v2597
    %v2619 = vpack.c.bf16 %v2603, %v2598
    %v2620 = vpack.c.bf16 %v2609, %v2604
    %v2621 = vpack.c.bf16 %v2610, %v2605
    %v2622 = vpack.c.bf16 %v2611, %v2606
    %v2623 = vpack.c.bf16 %v2612, %v2607
    %v2624 = vpack.c.bf16 %v2613, %v2608
    %v2625 = vld [vmem:[%s11] sm:$0xff]
    %2627 = vset.pattern.permute.xlu0 0
    %2628 = vperm.xlu0 %2627, %v2625
    %v2629 = vpop.permute.xlu0 %2628
    %2641 = vrot.lane.b32.xlu0 %v2615, 17
    %v2642 = vpop.permute.xlu0 %2641
    %2643 = vrot.lane.b32.xlu0 %v2616, 17
    %v2644 = vpop.permute.xlu0 %2643
    %2645 = vrot.lane.b32.xlu0 %v2617, 17
    %v2646 = vpop.permute.xlu0 %2645
    %2647 = vrot.lane.b32.xlu0 %v2618, 17
    %v2648 = vpop.permute.xlu0 %2647
    %2649 = vrot.lane.b32.xlu0 %v2619, 17
    %v2650 = vpop.permute.xlu0 %2649
    %2651 = vrot.lane.b32.xlu0 %v2620, 17
    %v2652 = vpop.permute.xlu0 %2651
    %2653 = vrot.lane.b32.xlu0 %v2621, 17
    %v2654 = vpop.permute.xlu0 %2653
    %2655 = vrot.lane.b32.xlu0 %v2622, 17
    %v2656 = vpop.permute.xlu0 %2655
    %2657 = vrot.lane.b32.xlu0 %v2623, 17
    %v2658 = vpop.permute.xlu0 %2657
    %2659 = vrot.lane.b32.xlu0 %v2624, 17
    %v2660 = vpop.permute.xlu0 %2659
    %v2661 = vsel %vm2199, %v2642, %v2644
    %v2662 = vsel %vm2199, %v2644, %v2646
    %v2663 = vsel %vm2199, %v2646, %v2648
    %v2664 = vsel %vm2199, %v2648, %v2650
    %v2665 = vsel %vm2199, %v2652, %v2654
    %v2666 = vsel %vm2199, %v2654, %v2656
    %v2667 = vsel %vm2199, %v2656, %v2658
    %v2668 = vsel %vm2199, %v2658, %v2660
    %v2678 = vsel %vm2216, %v2614, 0
    %2680 = vmatpush.bf16.msra.mxu0 0
    %2681 = vmatpush.bf16.msra.mxu0 0
    %2682 = vmatpush.bf16.msra.mxu0 0
    %2683 = vmatpush.bf16.msra.mxu0 0
    %2684 = vmatpush.bf16.msra.mxu0 0
    %2685 = vmatpush.bf16.msra.mxu0 0
    %2686 = vmatpush.bf16.msra.mxu0 %v2665
    %2687 = vmatpush.bf16.msra.mxu0 %v2661
    %2688 = vmatmul.bf16.gmra.mxu0 %v2678
    %v2689 = vpop.f32.mrf.mxu0
    %v2690 = vadd.f32 %v2629, %v2689
    %v2691 = vpop.f32.mrf.mxu0
    %2692 = vdwg.mxu0
    %2693 = vmatpush.bf16.msra.mxu0 0
    %2694 = vmatpush.bf16.msra.mxu0 0
    %2695 = vmatpush.bf16.msra.mxu0 0
    %2696 = vmatpush.bf16.msra.mxu0 0
    %2697 = vmatpush.bf16.msra.mxu0 0
    %2698 = vmatpush.bf16.msra.mxu0 0
    %2699 = vmatpush.bf16.msra.mxu0 %v2666
    %2700 = vmatpush.bf16.msra.mxu0 %v2662
    %2701 = vmatmul.bf16.gmra.mxu0 %v2678
    %v2702 = vpop.f32.mrf.mxu0
    %v2703 = vadd.f32 %v2629, %v2702
    %v2704 = vpop.f32.mrf.mxu0
    %2705 = vdwg.mxu0
    %2706 = vmatpush.bf16.msra.mxu0 0
    %2707 = vmatpush.bf16.msra.mxu0 0
    %2708 = vmatpush.bf16.msra.mxu0 0
    %2709 = vmatpush.bf16.msra.mxu0 0
    %2710 = vmatpush.bf16.msra.mxu0 0
    %2711 = vmatpush.bf16.msra.mxu0 0
    %2712 = vmatpush.bf16.msra.mxu0 %v2667
    %2713 = vmatpush.bf16.msra.mxu0 %v2663
    %2714 = vmatmul.bf16.gmra.mxu0 %v2678
    %v2715 = vpop.f32.mrf.mxu0
    %v2716 = vadd.f32 %v2629, %v2715
    %v2717 = vpop.f32.mrf.mxu0
    %2718 = vdwg.mxu0
    %2719 = vmatpush.bf16.msra.mxu0 0
    %2720 = vmatpush.bf16.msra.mxu0 0
    %2721 = vmatpush.bf16.msra.mxu0 0
    %2722 = vmatpush.bf16.msra.mxu0 0
    %2723 = vmatpush.bf16.msra.mxu0 0
    %2724 = vmatpush.bf16.msra.mxu0 0
    %2725 = vmatpush.bf16.msra.mxu0 %v2668
    %2726 = vmatpush.bf16.msra.mxu0 %v2664
    %2727 = vmatmul.bf16.gmra.mxu0 %v2678
    %v2728 = vpop.f32.mrf.mxu0
    %v2729 = vadd.f32 %v2629, %v2728
    %v2730 = vpop.f32.mrf.mxu0
    %2731 = vdwg.mxu0
    %v2732 = vadd.f32 %v2690, %v43
    %v2733 = vadd.f32 %v2703, %v44
    %v2734 = vadd.f32 %v2716, %v45
    %v2735 = vadd.f32 %v2729, %v46
    %2736 = vst [vmem:[#allocation3] sm:$0xff] %v2732
    %2737 = vst [vmem:[#allocation3 + $0x8] sm:$0xff] %v2733
    %2738 = vst [vmem:[#allocation3 + $0x10] sm:$0xff] %v2734
    %2739 = vst [vmem:[#allocation3 + $0x18] sm:$0xff] %v2735
    // Predicated region
    $region50: #{tpu_custom_call.1} parent=1 // pred_check
      _
    $region51: #{tpu_custom_call.1} parent=1 // pred_check_branch
      %2741 = sbr.rel (0) target = $region53
    $region52: #{tpu_custom_call.1} parent=1 // pred_region
      %2743 = vsyncadd [#allocation4], 0
      %s2745 = sshll.u32 [#allocation3], 4
      %s2746 = int_to_ptr.vmem [resolvable:$true] %s2745
      %s2747 = sshll.u32 %s12, 4
      %s2748 = int_to_ptr.hbm [resolvable:$true] %s2747
      %2750 = dma.vmem_to_hbm [thread:$0]  %s2746, 512, %s2748, [#allocation4]
    $region53: #{tpu_custom_call.1} parent=1 // pred_fallthru
      _
    // Predicated region
    $region54: #{tpu_custom_call.1} parent=1 // pred_check
      _
    $region55: #{tpu_custom_call.1} parent=1 // pred_check_branch
      %2752 = sbr.rel (0) target = $region57
    $region56: #{tpu_custom_call.1} parent=1 // pred_region
      %2754 = dma.done [#allocation4], 512
    $region57: #{tpu_custom_call.1} parent=1 // pred_fallthru
      _
    %2755 = vsyncpa [#allocation4], 1

</llo_original>
